<compile_context>
chip_gen: v5e
topology: v5e:2x2
jax: 0.10.0
libtpu: 0.0.40
codegen_flags: <defaults>
</compile_context>

<pallas_src>
import math

import jax
import jax.numpy as jnp
from jax.experimental import pallas as pl
from jax.experimental.pallas import tpu as pltpu


def _round_up(x: int, m: int) -> int:
    return ((x + m - 1) // m) * m


# ---------------------------------------------------------------------------
# Kernels
# ---------------------------------------------------------------------------
def _time_embed_kernel_concat(time_ref, freqs_ref, w1_ref, b1_ref, w2_ref, b2_ref,
                              out_ref):
    # time_ref : (TB, 1)   f32      freqs_ref: (1, H)   f32
    # w1_ref   : (2H, Dp)  bf16     b1_ref   : (1, Dp)  f32
    # w2_ref   : (Dp, Dp)  bf16     b2_ref   : (1, Dp)  f32
    # out_ref  : (TB, Dp)  f32
    emb = time_ref[...] * freqs_ref[...]                              # f32, VPU bcast
    sc = jnp.concatenate([jnp.sin(emb), jnp.cos(emb)], axis=-1)       # (TB, 2H) f32
    h = jnp.dot(sc.astype(w1_ref.dtype), w1_ref[...],
                preferred_element_type=jnp.float32)                   # single MXU pass
    h += b1_ref[...]
    h = h * jax.nn.sigmoid(h)                                         # SiLU (EUP), f32
    out = jnp.dot(h.astype(w2_ref.dtype), w2_ref[...],
                  preferred_element_type=jnp.float32)
    out += b2_ref[...]
    out_ref[...] = out.astype(out_ref.dtype)


def _time_embed_kernel_split(time_ref, freqs_ref, w1s_ref, w1c_ref, b1_ref, w2_ref,
                             b2_ref, out_ref):
    # Split-W1 variant (no lane concat); used only when half_dim % 128 == 0, so each
    # dot's K is already MXU-tile aligned and the split costs no extra K padding.
    emb = time_ref[...] * freqs_ref[...]
    s = jnp.sin(emb).astype(w1s_ref.dtype)
    c = jnp.cos(emb).astype(w1c_ref.dtype)
    h = jnp.dot(s, w1s_ref[...], preferred_element_type=jnp.float32)
    h += jnp.dot(c, w1c_ref[...], preferred_element_type=jnp.float32)
    h += b1_ref[...]
    h = h * jax.nn.sigmoid(h)
    out = jnp.dot(h.astype(w2_ref.dtype), w2_ref[...],
                  preferred_element_type=jnp.float32)
    out += b2_ref[...]
    out_ref[...] = out.astype(out_ref.dtype)


# ---------------------------------------------------------------------------
# Wrapper
# ---------------------------------------------------------------------------
def time_embed(time, w1, b1, w2, b2, *, tb=None, matmul_dtype=jnp.bfloat16):
    """Pallas-fused TimeEmbed(input_dim, output_dim)(time).

    y = silu([sin(t*f) | cos(t*f)] @ w1 + b1) @ w2 + b2
    w1: (input_dim, output_dim), b1/b2: (output_dim,), w2: (output_dim, output_dim)
    """
    assert time.ndim == 1, "time must be a 1-D tensor of timestamps"
    input_dim, output_dim = w1.shape
    assert input_dim % 2 == 0, "input_dim must be even"
    half_dim = input_dim // 2
    assert half_dim > 1, "input_dim must be >= 4 (half_dim - 1 divides log scale)"
    assert b1.shape == (output_dim,)
    assert w2.shape == (output_dim, output_dim)
    assert b2.shape == (output_dim,)

    itemsize = jnp.dtype(matmul_dtype).itemsize

    # Lane-dense output width (multiple of 128) -> unmasked vst, full MXU lanes.
    d_pad = _round_up(output_dim, 128)
    pad_d = d_pad - output_dim

    # Compile-time constant frequency table (no per-step EUP exp in the kernel).
    log_scale = math.log(10000.0) / (half_dim - 1)
    freqs = jnp.exp(jnp.arange(half_dim, dtype=jnp.float32) * (-log_scale)
                    ).reshape(1, half_dim)

    w1p = jnp.pad(w1.astype(jnp.float32), ((0, 0), (0, pad_d))).astype(matmul_dtype)
    b1p = jnp.pad(b1.astype(jnp.float32), (0, pad_d)).reshape(1, d_pad)
    w2p = jnp.pad(w2.astype(jnp.float32), ((0, pad_d), (0, pad_d))).astype(matmul_dtype)
    b2p = jnp.pad(b2.astype(jnp.float32), (0, pad_d)).reshape(1, d_pad)

    # Resident (single-buffered) weight footprint + per-row activation traffic.
    weight_bytes = (128 * 4                               # freqs (lane-padded)
                    + input_dim * d_pad * itemsize        # W1
                    + d_pad * 4                           # b1
                    + d_pad * d_pad * itemsize            # W2
                    + d_pad * 4)                          # b2
    per_row_bytes = 2 * (d_pad * 4) + 2 * (128 * 4)       # dbl-buffered out + time tiles

    b = time.shape[0]
    if tb is None:
        # Stay inside the 32 MiB scoped-VMEM default (conservative for v7x's 64 MiB
        # physical VMEM); cap at 1024 rows; keep >= 2 grid steps when possible so the
        # "parallel" grid axis can shard across both TensorCores.
        budget = (32 << 20) - weight_bytes - (2 << 20)
        tb = max(8, min(1024, (budget // per_row_bytes) // 8 * 8))
        if b <= tb:
            tb = _round_up(max((b + 1) // 2, 4), 8) if b >= 16 else _round_up(max(b, 1), 8)
    bp = _round_up(b, tb)
    grid = (bp // tb,)

    time2d = jnp.pad(time.astype(jnp.float32), (0, bp - b)).reshape(bp, 1)

    # TODO(synk): for very large output_dim (W2 alone exceeding the VMEM budget) W2
    # should additionally be tiled over its N axis with a second grid dimension.
    use_split = (half_dim % 128 == 0)
    if use_split:
        kernel = _time_embed_kernel_split
        w1_args = (w1p[:half_dim], w1p[half_dim:])
        w1_shapes = [(half_dim, d_pad), (half_dim, d_pad)]
    else:
        kernel = _time_embed_kernel_concat
        w1_args = (w1p,)
        w1_shapes = [(input_dim, d_pad)]

    vmem_need = weight_bytes + tb * per_row_bytes
    vmem_limit = min(max(vmem_need + (4 << 20), 32 << 20), 48 << 20)

    def run(weight_buffers):
        if weight_buffers is None:
            def wspec(shape):
                return pl.BlockSpec(shape, lambda i: (0, 0))
        else:
            def wspec(shape):
                return pl.BlockSpec(shape, lambda i: (0, 0),
                                    pipeline_mode=pl.Buffered(weight_buffers))
        in_specs = [pl.BlockSpec((tb, 1), lambda i: (i, 0)),          # time (pipelined)
                    wspec((1, half_dim)),                             # freqs
                    *[wspec(s) for s in w1_shapes],                   # W1 (full or split)
                    wspec((1, d_pad)),                                # b1
                    wspec((d_pad, d_pad)),                            # W2
                    wspec((1, d_pad))]                                # b2
        return pl.pallas_call(
            kernel,
            out_shape=jax.ShapeDtypeStruct((bp, d_pad), jnp.float32),
            grid_spec=pltpu.PrefetchScalarGridSpec(
                num_scalar_prefetch=0,
                grid=grid,
                in_specs=in_specs,
                out_specs=pl.BlockSpec((tb, d_pad), lambda i: (i, 0)),
            ),
            compiler_params=pltpu.CompilerParams(
                dimension_semantics=("parallel",),
                vmem_limit_bytes=vmem_limit,
            ),
        )(time2d, freqs, *w1_args, b1p, w2p, b2p)

    try:
        out = run(1)            # single-buffer the grid-invariant weights
    except Exception:           # pragma: no cover — fall back if Buffered(1) rejected
        out = run(None)

    return out[:b, :output_dim]


# ---------------------------------------------------------------------------
# Reference + demo
# ---------------------------------------------------------------------------
def _reference(time, w1, b1, w2, b2):
    """Pure-JAX reference mirroring the PyTorch TimeEmbed forward (f32)."""
    input_dim = w1.shape[0]
    half_dim = input_dim // 2
    scale = math.log(10000.0) / (half_dim - 1)
    freqs = jnp.exp(jnp.arange(half_dim, dtype=jnp.float32) * -scale)
    emb = time.astype(jnp.float32)[:, None] * freqs[None, :]
    emb = jnp.concatenate([jnp.sin(emb), jnp.cos(emb)], axis=-1)
    h = emb @ w1 + b1
    h = h * jax.nn.sigmoid(h)          # SiLU
    return h @ w2 + b2


if __name__ == "__main__":
    key = jax.random.PRNGKey(0)
    k_t, k_w1, k_b1, k_w2, k_b2 = jax.random.split(key, 5)

    B, INPUT_DIM, OUTPUT_DIM = 16, 32, 64

    time = jax.random.uniform(k_t, (B,), dtype=jnp.float32, minval=0.0, maxval=100.0)
    w1 = 0.05 * jax.random.normal(k_w1, (INPUT_DIM, OUTPUT_DIM), dtype=jnp.float32)
    b1 = 0.05 * jax.random.normal(k_b1, (OUTPUT_DIM,), dtype=jnp.float32)
    w2 = 0.05 * jax.random.normal(k_w2, (OUTPUT_DIM, OUTPUT_DIM), dtype=jnp.float32)
    b2 = 0.05 * jax.random.normal(k_b2, (OUTPUT_DIM,), dtype=jnp.float32)

    out = time_embed(time, w1, b1, w2, b2)
    out = jax.block_until_ready(out)

    ref = _reference(time, w1, b1, w2, b2)
    assert out.shape == (B, OUTPUT_DIM), out.shape
    assert out.dtype == jnp.float32, out.dtype
    # bf16 MXU inputs with f32 accumulation -> looser tolerance than a pure-f32 path.
    assert jnp.allclose(out, ref, atol=3e-2, rtol=3e-2), "mismatch vs reference"

    print("KERNEL_OK")
</pallas_src>

<mosaic_0001>
module attributes {stable_mosaic.version = 11 : i64} {
  func.func @_time_embed_kernel_concat(%arg0: i32, %arg1: memref<8x1xf32, #tpu.memory_space<vmem>>, %arg2: memref<1x16xf32, #tpu.memory_space<vmem>>, %arg3: memref<32x128xbf16, #tpu.memory_space<vmem>>, %arg4: memref<1x128xf32, #tpu.memory_space<vmem>>, %arg5: memref<128x128xbf16, #tpu.memory_space<vmem>>, %arg6: memref<1x128xf32, #tpu.memory_space<vmem>>, %arg7: memref<8x128xf32, #tpu.memory_space<vmem>>) attributes {dimension_semantics = [#tpu.dimension_semantics<parallel>], iteration_bounds = array<i64: 2>, scalar_prefetch = 0 : i64, scratch_operands = 0 : i64, tpu.core_type = #tpu.core_type<tc>, window_params = [{transform_indices = @transform_0, window_bounds = array<i64: 8, 1>}, {pipeline_mode = #tpu.pipeline_mode<synchronous>, transform_indices = @transform_1, window_bounds = array<i64: 1, 16>}, {pipeline_mode = #tpu.pipeline_mode<synchronous>, transform_indices = @transform_2, window_bounds = array<i64: 32, 128>}, {pipeline_mode = #tpu.pipeline_mode<synchronous>, transform_indices = @transform_3, window_bounds = array<i64: 1, 128>}, {pipeline_mode = #tpu.pipeline_mode<synchronous>, transform_indices = @transform_4, window_bounds = array<i64: 128, 128>}, {pipeline_mode = #tpu.pipeline_mode<synchronous>, transform_indices = @transform_5, window_bounds = array<i64: 1, 128>}, {transform_indices = @transform_6, window_bounds = array<i64: 8, 128>}]} {
    %c0 = arith.constant 0 : index
    %c0_0 = arith.constant 0 : index
    %0 = vector.load %arg1[%c0, %c0_0] : memref<8x1xf32, #tpu.memory_space<vmem>>, vector<8x1xf32>
    %c0_1 = arith.constant 0 : index
    %c0_2 = arith.constant 0 : index
    %1 = vector.load %arg2[%c0_1, %c0_2] : memref<1x16xf32, #tpu.memory_space<vmem>>, vector<1x16xf32>
    %2 = vector.broadcast %0 : vector<8x1xf32> to vector<8x16xf32>
    %3 = vector.broadcast %1 : vector<1x16xf32> to vector<8x16xf32>
    %4 = arith.mulf %2, %3 : vector<8x16xf32>
    %5 = math.sin %4 : vector<8x16xf32>
    %6 = math.cos %4 : vector<8x16xf32>
    %7 = tpu.concatenate %5, %6 in 1 : vector<8x16xf32>, vector<8x16xf32> -> vector<8x32xf32>
    %8 = arith.truncf %7 : vector<8x32xf32> to vector<8x32xbf16>
    %c0_3 = arith.constant 0 : index
    %c0_4 = arith.constant 0 : index
    %9 = vector.load %arg3[%c0_3, %c0_4] : memref<32x128xbf16, #tpu.memory_space<vmem>>, vector<32x128xbf16>
    %cst = arith.constant dense<0.000000e+00> : vector<8x128xf32>
    %10 = tpu.matmul %8, %9, %cst {dimension_numbers = #tpu.dot_dimension_numbers<[1], [0], [0], [1], [0, 0, 1, 1], [], []>} : vector<8x32xbf16>, vector<32x128xbf16>, vector<8x128xf32> -> vector<8x128xf32>
    %c0_5 = arith.constant 0 : index
    %c0_6 = arith.constant 0 : index
    %11 = vector.load %arg4[%c0_5, %c0_6] : memref<1x128xf32, #tpu.memory_space<vmem>>, vector<1x128xf32>
    %12 = vector.broadcast %11 : vector<1x128xf32> to vector<8x128xf32>
    %13 = arith.addf %10, %12 : vector<8x128xf32>
    %14 = arith.negf %13 : vector<8x128xf32>
    %15 = math.exp %14 : vector<8x128xf32>
    %cst_7 = arith.constant 1.000000e+00 : f32
    %16 = vector.broadcast %cst_7 : f32 to vector<8x128xf32>
    %17 = arith.addf %16, %15 : vector<8x128xf32>
    %18 = arith.divf %16, %17 : vector<8x128xf32>
    %19 = arith.mulf %13, %18 : vector<8x128xf32>
    %20 = arith.truncf %19 : vector<8x128xf32> to vector<8x128xbf16>
    %c0_8 = arith.constant 0 : index
    %c0_9 = arith.constant 0 : index
    %21 = vector.load %arg5[%c0_8, %c0_9] : memref<128x128xbf16, #tpu.memory_space<vmem>>, vector<128x128xbf16>
    %cst_10 = arith.constant dense<0.000000e+00> : vector<8x128xf32>
    %22 = tpu.matmul %20, %21, %cst_10 {dimension_numbers = #tpu.dot_dimension_numbers<[1], [0], [0], [1], [0, 0, 1, 1], [], []>} : vector<8x128xbf16>, vector<128x128xbf16>, vector<8x128xf32> -> vector<8x128xf32>
    %c0_11 = arith.constant 0 : index
    %c0_12 = arith.constant 0 : index
    %23 = vector.load %arg6[%c0_11, %c0_12] : memref<1x128xf32, #tpu.memory_space<vmem>>, vector<1x128xf32>
    %24 = vector.broadcast %23 : vector<1x128xf32> to vector<8x128xf32>
    %25 = arith.addf %22, %24 : vector<8x128xf32>
    %c0_13 = arith.constant 0 : index
    %c0_14 = arith.constant 0 : index
    %26 = vector.load %arg7[%c0_13, %c0_14] : memref<8x128xf32, #tpu.memory_space<vmem>>, vector<8x128xf32>
    tpu.vector_store %arg7[%c0_13, %c0_14], %25 {strides = array<i32>} : memref<8x128xf32, #tpu.memory_space<vmem>>, vector<8x128xf32>,
    return
  }
  func.func @transform_0(%arg0: i32) -> (i32, i32) {
    %c0_i32 = arith.constant 0 : i32
    %c0_i32_0 = arith.constant 0 : i32
    return %arg0, %c0_i32 : i32, i32
  }
  func.func @transform_1(%arg0: i32) -> (i32, i32) {
    %c0_i32 = arith.constant 0 : i32
    %c0_i32_0 = arith.constant 0 : i32
    %c0_i32_1 = arith.constant 0 : i32
    return %c0_i32, %c0_i32_0 : i32, i32
  }
  func.func @transform_2(%arg0: i32) -> (i32, i32) {
    %c0_i32 = arith.constant 0 : i32
    %c0_i32_0 = arith.constant 0 : i32
    %c0_i32_1 = arith.constant 0 : i32
    return %c0_i32, %c0_i32_0 : i32, i32
  }
  func.func @transform_3(%arg0: i32) -> (i32, i32) {
    %c0_i32 = arith.constant 0 : i32
    %c0_i32_0 = arith.constant 0 : i32
    %c0_i32_1 = arith.constant 0 : i32
    return %c0_i32, %c0_i32_0 : i32, i32
  }
  func.func @transform_4(%arg0: i32) -> (i32, i32) {
    %c0_i32 = arith.constant 0 : i32
    %c0_i32_0 = arith.constant 0 : i32
    %c0_i32_1 = arith.constant 0 : i32
    return %c0_i32, %c0_i32_0 : i32, i32
  }
  func.func @transform_5(%arg0: i32) -> (i32, i32) {
    %c0_i32 = arith.constant 0 : i32
    %c0_i32_0 = arith.constant 0 : i32
    %c0_i32_1 = arith.constant 0 : i32
    return %c0_i32, %c0_i32_0 : i32, i32
  }
  func.func @transform_6(%arg0: i32) -> (i32, i32) {
    %c0_i32 = arith.constant 0 : i32
    %c0_i32_0 = arith.constant 0 : i32
    return %arg0, %c0_i32 : i32, i32
  }
}

module attributes {stable_mosaic.version = 11 : i64} {
  func.func @_time_embed_kernel_concat(%arg0: i32, %arg1: memref<8x1xf32, #tpu.memory_space<vmem>>, %arg2: memref<1x16xf32, #tpu.memory_space<vmem>>, %arg3: memref<32x128xbf16, #tpu.memory_space<vmem>>, %arg4: memref<1x128xf32, #tpu.memory_space<vmem>>, %arg5: memref<128x128xbf16, #tpu.memory_space<vmem>>, %arg6: memref<1x128xf32, #tpu.memory_space<vmem>>, %arg7: memref<8x128xf32, #tpu.memory_space<vmem>>) attributes {dimension_semantics = [#tpu.dimension_semantics<parallel>], iteration_bounds = array<i64: 2>, scalar_prefetch = 0 : i64, scratch_operands = 0 : i64, tpu.core_type = #tpu.core_type<tc>, window_params = [{transform_indices = @transform_0, window_bounds = array<i64: 8, 1>}, {pipeline_mode = #tpu.pipeline_mode<synchronous>, transform_indices = @transform_1, window_bounds = array<i64: 1, 16>}, {pipeline_mode = #tpu.pipeline_mode<synchronous>, transform_indices = @transform_2, window_bounds = array<i64: 32, 128>}, {pipeline_mode = #tpu.pipeline_mode<synchronous>, transform_indices = @transform_3, window_bounds = array<i64: 1, 128>}, {pipeline_mode = #tpu.pipeline_mode<synchronous>, transform_indices = @transform_4, window_bounds = array<i64: 128, 128>}, {pipeline_mode = #tpu.pipeline_mode<synchronous>, transform_indices = @transform_5, window_bounds = array<i64: 1, 128>}, {transform_indices = @transform_6, window_bounds = array<i64: 8, 128>}]} {
    %c0 = arith.constant 0 : index
    %c0_0 = arith.constant 0 : index
    %0 = vector.load %arg1[%c0, %c0_0] : memref<8x1xf32, #tpu.memory_space<vmem>>, vector<8x1xf32>
    %c0_1 = arith.constant 0 : index
    %c0_2 = arith.constant 0 : index
    %1 = vector.load %arg2[%c0_1, %c0_2] : memref<1x16xf32, #tpu.memory_space<vmem>>, vector<1x16xf32>
    %2 = vector.broadcast %0 : vector<8x1xf32> to vector<8x16xf32>
    %3 = vector.broadcast %1 : vector<1x16xf32> to vector<8x16xf32>
    %4 = arith.mulf %2, %3 : vector<8x16xf32>
    %5 = math.sin %4 : vector<8x16xf32>
    %6 = math.cos %4 : vector<8x16xf32>
    %7 = tpu.concatenate %5, %6 in 1 : vector<8x16xf32>, vector<8x16xf32> -> vector<8x32xf32>
    %8 = arith.truncf %7 : vector<8x32xf32> to vector<8x32xbf16>
    %c0_3 = arith.constant 0 : index
    %c0_4 = arith.constant 0 : index
    %9 = vector.load %arg3[%c0_3, %c0_4] : memref<32x128xbf16, #tpu.memory_space<vmem>>, vector<32x128xbf16>
    %cst = arith.constant dense<0.000000e+00> : vector<8x128xf32>
    %10 = tpu.matmul %8, %9, %cst {dimension_numbers = #tpu.dot_dimension_numbers<[1], [0], [0], [1], [0, 0, 1, 1], [], []>} : vector<8x32xbf16>, vector<32x128xbf16>, vector<8x128xf32> -> vector<8x128xf32>
    %c0_5 = arith.constant 0 : index
    %c0_6 = arith.constant 0 : index
    %11 = vector.load %arg4[%c0_5, %c0_6] : memref<1x128xf32, #tpu.memory_space<vmem>>, vector<1x128xf32>
    %12 = vector.broadcast %11 : vector<1x128xf32> to vector<8x128xf32>
    %13 = arith.addf %10, %12 : vector<8x128xf32>
    %14 = arith.negf %13 : vector<8x128xf32>
    %15 = math.exp %14 : vector<8x128xf32>
    %cst_7 = arith.constant 1.000000e+00 : f32
    %16 = vector.broadcast %cst_7 : f32 to vector<8x128xf32>
    %17 = arith.addf %16, %15 : vector<8x128xf32>
    %18 = arith.divf %16, %17 : vector<8x128xf32>
    %19 = arith.mulf %13, %18 : vector<8x128xf32>
    %20 = arith.truncf %19 : vector<8x128xf32> to vector<8x128xbf16>
    %c0_8 = arith.constant 0 : index
    %c0_9 = arith.constant 0 : index
    %21 = vector.load %arg5[%c0_8, %c0_9] : memref<128x128xbf16, #tpu.memory_space<vmem>>, vector<128x128xbf16>
    %cst_10 = arith.constant dense<0.000000e+00> : vector<8x128xf32>
    %22 = tpu.matmul %20, %21, %cst_10 {dimension_numbers = #tpu.dot_dimension_numbers<[1], [0], [0], [1], [0, 0, 1, 1], [], []>} : vector<8x128xbf16>, vector<128x128xbf16>, vector<8x128xf32> -> vector<8x128xf32>
    %c0_11 = arith.constant 0 : index
    %c0_12 = arith.constant 0 : index
    %23 = vector.load %arg6[%c0_11, %c0_12] : memref<1x128xf32, #tpu.memory_space<vmem>>, vector<1x128xf32>
    %24 = vector.broadcast %23 : vector<1x128xf32> to vector<8x128xf32>
    %25 = arith.addf %22, %24 : vector<8x128xf32>
    %c0_13 = arith.constant 0 : index
    %c0_14 = arith.constant 0 : index
    %26 = vector.load %arg7[%c0_13, %c0_14] : memref<8x128xf32, #tpu.memory_space<vmem>>, vector<8x128xf32>
    tpu.vector_store %arg7[%c0_13, %c0_14], %25 {strides = array<i32>} : memref<8x128xf32, #tpu.memory_space<vmem>>, vector<8x128xf32>,
    return
  }
  func.func @transform_0(%arg0: i32) -> (i32, i32) {
    %c0_i32 = arith.constant 0 : i32
    %c0_i32_0 = arith.constant 0 : i32
    return %arg0, %c0_i32 : i32, i32
  }
  func.func @transform_1(%arg0: i32) -> (i32, i32) {
    %c0_i32 = arith.constant 0 : i32
    %c0_i32_0 = arith.constant 0 : i32
    %c0_i32_1 = arith.constant 0 : i32
    return %c0_i32, %c0_i32_0 : i32, i32
  }
  func.func @transform_2(%arg0: i32) -> (i32, i32) {
    %c0_i32 = arith.constant 0 : i32
    %c0_i32_0 = arith.constant 0 : i32
    %c0_i32_1 = arith.constant 0 : i32
    return %c0_i32, %c0_i32_0 : i32, i32
  }
  func.func @transform_3(%arg0: i32) -> (i32, i32) {
    %c0_i32 = arith.constant 0 : i32
    %c0_i32_0 = arith.constant 0 : i32
    %c0_i32_1 = arith.constant 0 : i32
    return %c0_i32, %c0_i32_0 : i32, i32
  }
  func.func @transform_4(%arg0: i32) -> (i32, i32) {
    %c0_i32 = arith.constant 0 : i32
    %c0_i32_0 = arith.constant 0 : i32
    %c0_i32_1 = arith.constant 0 : i32
    return %c0_i32, %c0_i32_0 : i32, i32
  }
  func.func @transform_5(%arg0: i32) -> (i32, i32) {
    %c0_i32 = arith.constant 0 : i32
    %c0_i32_0 = arith.constant 0 : i32
    %c0_i32_1 = arith.constant 0 : i32
    return %c0_i32, %c0_i32_0 : i32, i32
  }
  func.func @transform_6(%arg0: i32) -> (i32, i32) {
    %c0_i32 = arith.constant 0 : i32
    %c0_i32_0 = arith.constant 0 : i32
    return %arg0, %c0_i32 : i32, i32
  }
}

</mosaic_0001>

<llo_original>
// kernel: tpu_custom_call.1
$region0: #{tpu_custom_call.1}
  #allocation0 [shape = 'u32[]', space=smem, size = 0x4, offset = 0x4, fixed_abs, tag = 'smem constant byte address 0x4 - core index']
  #allocation1 [shape = 'u32[72,128]{1,0:T(1,128)}', space=vmem, size = 0x9000, scoped, tag = 'internal scratch']
  %s0 = inlined_call_operand.vmem [shape: f32[16,1], index: 0, kind: input, shape index: {}]
  %s1 = inlined_call_operand.vmem [shape: f32[1,16], index: 1, kind: input, shape index: {}]
  %s2 = inlined_call_operand.vmem [shape: bf16[32,128], index: 2, kind: input, shape index: {}]
  %s3 = inlined_call_operand.vmem [shape: f32[1,128], index: 3, kind: input, shape index: {}]
  %s4 = inlined_call_operand.hbm [shape: bf16[128,128], index: 4, kind: input, shape index: {}]
  %s5 = inlined_call_operand.vmem [shape: f32[1,128], index: 5, kind: input, shape index: {}]
  %s6 = inlined_call_operand.hbm [shape: f32[16,128], index: 6, kind: output, shape index: {}]
  %s7 = sld [smem:[#allocation0]]
  $region61: #{tpu_custom_call.1} parent=0
    _
  %s9 = ssub.s32 1, %s7
  %s10 = scalar_select 0, %s9, %s7
  $region1: #{tpu_custom_call.1} parent=0
    #allocation2 [shape = 'u8[32768]{0}', space=vmem, size = 0x8000, scoped, tag = 'input window, operand 4, single buffered']
    #allocation3 [shape = 's32[2]{0}', space=sflag, size = 0x8, scoped, tag = 'scoped memory for tpu_custom_call.1']
    #allocation4 [shape = 's32[2]{0}', space=sflag, size = 0x8, scoped, tag = 'scoped memory for tpu_custom_call.1']
    #allocation5 [shape = 'u8[8192]{0}', space=vmem, size = 0x2000, scoped, tag = 'output window, operand 0']
    %11 = vsyncpa [#allocation3], 0
    %12 = vsyncpa [#allocation4], 0
    %s13 = scalar_lea.sflag [#allocation4], 1
    %14 = vsyncpa %s13, 0
    loop: start=0, step=1, limit=4
    $region2: #{tpu_custom_call.1} parent=1 // loop_pre_header
      _
    $region3: #{tpu_custom_call.1} parent=1 // loop_header
      %s16 = sphi 0, %s20
      %p17 = scmp.ge.s32.totalorder %s16, 4
      %s26 = sphi 0, %s28
      %s29 = sphi 0, %s26
      %s30 = sphi 0, %s29
      %s46 = sphi 0, %s30
      %s50 = sphi 0, %s50
      %s52 = sphi 0, %s50
      %s53 = sphi 0, %s52
      %s67 = sphi 0, %s53
      %s71 = sphi 0, %s71
      %s73 = sphi 0, %s71
      %s74 = sphi 0, %s73
      %s88 = sphi 0, %s74
      %s92 = sphi 0, %s92
      %s94 = sphi 0, %s92
      %s95 = sphi 0, %s94
      %s109 = sphi 0, %s95
      %s113 = sphi 0, %s113
      %s115 = sphi 0, %s113
      %s116 = sphi 0, %s115
      %s130 = sphi 0, %s116
      %s134 = sphi 0, %s134
      %s136 = sphi 0, %s134
      %s137 = sphi 0, %s136
      %s151 = sphi 0, %s137
      %s157 = sphi 0, %s159
      %s160 = sphi 0, %s157
      %s161 = sphi 0, %s160
      %s177 = sphi 0, %s161
    $region4: #{tpu_custom_call.1} parent=1 // loop_header_branch
      %19 = sbr.rel (%p17) target = $region8
    $region5: #{tpu_custom_call.1} parent=1 // loop_body
      %s21 = ssub.s32 %s16, 1
      %s22 = ssub.s32 %s16, 2
      %s23 = sadd.s32 %s16, 1
      %s24 = ssub.s32 %s16, %s23
      %p25 = scmp.eq.s32.totalorder %s24, 0
      %s27 = sadd.s32 %s26, 1
      %s28 = scalar_select %p25, %s26, %s27
      %p31 = pneg %p25
      %p32 = scmp.eq.s32.totalorder %s16, 1
      %p33 = por %p31, %p32
      %p34 = scmp.ne.s32.totalorder %s26, %s29
      %p35 = scmp.eq.s32.totalorder %s16, 0
      %p36 = por %p34, %p35
      %p37 = scmp.ne.s32.totalorder %s26, %s29
      %p38 = scmp.eq.s32.totalorder %s21, 1
      %p39 = por %p37, %p38
      %p40 = scmp.ne.s32.totalorder %s29, %s30
      %p41 = scmp.eq.s32.totalorder %s21, 0
      %p42 = por %p40, %p41
      %p43 = scmp.ne.s32.totalorder %s29, %s30
      %p44 = scmp.eq.s32.totalorder %s22, 1
      %p45 = por %p43, %p44
      %p47 = scmp.ne.s32.totalorder %s30, %s46
      %p48 = scmp.eq.s32.totalorder %s22, 0
      %p49 = por %p47, %p48
      %s51 = sadd.s32 %s50, 1
      %p54 = scmp.eq.s32.totalorder %s16, 1
      %p55 = scmp.ne.s32.totalorder %s50, %s52
      %p56 = scmp.eq.s32.totalorder %s16, 0
      %p57 = por %p55, %p56
      %p58 = scmp.ne.s32.totalorder %s50, %s52
      %p59 = scmp.eq.s32.totalorder %s21, 1
      %p60 = por %p58, %p59
      %p61 = scmp.ne.s32.totalorder %s52, %s53
      %p62 = scmp.eq.s32.totalorder %s21, 0
      %p63 = por %p61, %p62
      %p64 = scmp.ne.s32.totalorder %s52, %s53
      %p65 = scmp.eq.s32.totalorder %s22, 1
      %p66 = por %p64, %p65
      %p68 = scmp.ne.s32.totalorder %s53, %s67
      %p69 = scmp.eq.s32.totalorder %s22, 0
      %p70 = por %p68, %p69
      %s72 = sadd.s32 %s71, 1
      %p75 = scmp.eq.s32.totalorder %s16, 1
      %p76 = scmp.ne.s32.totalorder %s71, %s73
      %p77 = scmp.eq.s32.totalorder %s16, 0
      %p78 = por %p76, %p77
      %p79 = scmp.ne.s32.totalorder %s71, %s73
      %p80 = scmp.eq.s32.totalorder %s21, 1
      %p81 = por %p79, %p80
      %p82 = scmp.ne.s32.totalorder %s73, %s74
      %p83 = scmp.eq.s32.totalorder %s21, 0
      %p84 = por %p82, %p83
      %p85 = scmp.ne.s32.totalorder %s73, %s74
      %p86 = scmp.eq.s32.totalorder %s22, 1
      %p87 = por %p85, %p86
      %p89 = scmp.ne.s32.totalorder %s74, %s88
      %p90 = scmp.eq.s32.totalorder %s22, 0
      %p91 = por %p89, %p90
      %s93 = sadd.s32 %s92, 1
      %p96 = scmp.eq.s32.totalorder %s16, 1
      %p97 = scmp.ne.s32.totalorder %s92, %s94
      %p98 = scmp.eq.s32.totalorder %s16, 0
      %p99 = por %p97, %p98
      %p100 = scmp.ne.s32.totalorder %s92, %s94
      %p101 = scmp.eq.s32.totalorder %s21, 1
      %p102 = por %p100, %p101
      %p103 = scmp.ne.s32.totalorder %s94, %s95
      %p104 = scmp.eq.s32.totalorder %s21, 0
      %p105 = por %p103, %p104
      %p106 = scmp.ne.s32.totalorder %s94, %s95
      %p107 = scmp.eq.s32.totalorder %s22, 1
      %p108 = por %p106, %p107
      %p110 = scmp.ne.s32.totalorder %s95, %s109
      %p111 = scmp.eq.s32.totalorder %s22, 0
      %p112 = por %p110, %p111
      %s114 = sadd.s32 %s113, 1
      %p117 = scmp.eq.s32.totalorder %s16, 1
      %p118 = scmp.ne.s32.totalorder %s113, %s115
      %p119 = scmp.eq.s32.totalorder %s16, 0
      %p120 = por %p118, %p119
      %p121 = scmp.ne.s32.totalorder %s113, %s115
      %p122 = scmp.eq.s32.totalorder %s21, 1
      %p123 = por %p121, %p122
      %p124 = scmp.ne.s32.totalorder %s115, %s116
      %p125 = scmp.eq.s32.totalorder %s21, 0
      %p126 = por %p124, %p125
      %p127 = scmp.ne.s32.totalorder %s115, %s116
      %p128 = scmp.eq.s32.totalorder %s22, 1
      %p129 = por %p127, %p128
      %p131 = scmp.ne.s32.totalorder %s116, %s130
      %p132 = scmp.eq.s32.totalorder %s22, 0
      %p133 = por %p131, %p132
      %s135 = sadd.s32 %s134, 1
      %p138 = scmp.eq.s32.totalorder %s16, 1
      %p139 = scmp.ne.s32.totalorder %s134, %s136
      %p140 = scmp.eq.s32.totalorder %s16, 0
      %p141 = por %p139, %p140
      %p142 = scmp.ne.s32.totalorder %s134, %s136
      %p143 = scmp.eq.s32.totalorder %s21, 1
      %p144 = por %p142, %p143
      %p145 = scmp.ne.s32.totalorder %s136, %s137
      %p146 = scmp.eq.s32.totalorder %s21, 0
      %p147 = por %p145, %p146
      %p148 = scmp.ne.s32.totalorder %s136, %s137
      %p149 = scmp.eq.s32.totalorder %s22, 1
      %p150 = por %p148, %p149
      %p152 = scmp.ne.s32.totalorder %s137, %s151
      %p153 = scmp.eq.s32.totalorder %s22, 0
      %p154 = por %p152, %p153
      %s155 = ssub.s32 %s16, %s23
      %p156 = scmp.eq.s32.totalorder %s155, 0
      %s158 = sadd.s32 %s157, 1
      %s159 = scalar_select %p156, %s157, %s158
      %p162 = pneg %p156
      %p163 = scmp.eq.s32.totalorder %s16, 1
      %p164 = por %p162, %p163
      %p165 = scmp.ne.s32.totalorder %s157, %s160
      %p166 = scmp.eq.s32.totalorder %s16, 0
      %p167 = por %p165, %p166
      %p168 = scmp.ne.s32.totalorder %s157, %s160
      %p169 = scmp.eq.s32.totalorder %s21, 1
      %p170 = por %p168, %p169
      %p171 = scmp.ne.s32.totalorder %s160, %s161
      %p172 = scmp.eq.s32.totalorder %s21, 0
      %p173 = por %p171, %p172
      %p174 = scmp.ne.s32.totalorder %s160, %s161
      %p175 = scmp.eq.s32.totalorder %s22, 1
      %p176 = por %p174, %p175
      %p178 = scmp.ne.s32.totalorder %s161, %s177
      %p179 = scmp.eq.s32.totalorder %s22, 0
      %p180 = por %p178, %p179
      %p181 = scmp.le.s32.totalorder 1, %s16
      %p182 = scmp.lt.s32.totalorder %s16, 3
      %p183 = pnand %p181, %p182
      %p184 = pneg %p183
      // Predicated region
      $region9: #{tpu_custom_call.1} parent=5 // pred_check
        _
      $region10: #{tpu_custom_call.1} parent=5 // pred_check_branch
        %186 = sbr.rel (%p183) target = $region12
      $region11: #{tpu_custom_call.1} parent=5 // pred_region
        %s187 = ssub.s32 %s16, 1
        // Predicated region
        $region13: #{tpu_custom_call.1} parent=11 // pred_check
          %p188 = pneg %p63
        $region14: #{tpu_custom_call.1} parent=11 // pred_check_branch
          %190 = sbr.rel (%p188) target = $region16
        $region15: #{tpu_custom_call.1} parent=11 // pred_region
          _
        $region16: #{tpu_custom_call.1} parent=11 // pred_fallthru
          _
        // Predicated region
        $region17: #{tpu_custom_call.1} parent=11 // pred_check
          %p191 = pneg %p84
        $region18: #{tpu_custom_call.1} parent=11 // pred_check_branch
          %193 = sbr.rel (%p191) target = $region20
        $region19: #{tpu_custom_call.1} parent=11 // pred_region
          _
        $region20: #{tpu_custom_call.1} parent=11 // pred_fallthru
          _
        // Predicated region
        $region21: #{tpu_custom_call.1} parent=11 // pred_check
          %p194 = pneg %p105
        $region22: #{tpu_custom_call.1} parent=11 // pred_check_branch
          %196 = sbr.rel (%p194) target = $region24
        $region23: #{tpu_custom_call.1} parent=11 // pred_region
          _
        $region24: #{tpu_custom_call.1} parent=11 // pred_fallthru
          _
        // Predicated region
        $region25: #{tpu_custom_call.1} parent=11 // pred_check
          %p197 = pneg %p126
        $region26: #{tpu_custom_call.1} parent=11 // pred_check_branch
          %199 = sbr.rel (%p197) target = $region28
        $region27: #{tpu_custom_call.1} parent=11 // pred_region
          %201 = vsyncadd [#allocation3], 0
          %s202 = sshll.u32 %s4, 4
          %s203 = int_to_ptr.hbm [resolvable:$true] %s202
          %s204 = sshll.u32 [#allocation2], 4
          %s205 = int_to_ptr.vmem [resolvable:$true] %s204
          %210 = dma.hbm_to_vmem [thread:$0]  %s203, 1024, %s205, [#allocation3], 64, 64, 4
        $region28: #{tpu_custom_call.1} parent=11 // pred_fallthru
          _
        // Predicated region
        $region29: #{tpu_custom_call.1} parent=11 // pred_check
          %p211 = pneg %p147
        $region30: #{tpu_custom_call.1} parent=11 // pred_check_branch
          %213 = sbr.rel (%p211) target = $region32
        $region31: #{tpu_custom_call.1} parent=11 // pred_region
          _
        $region32: #{tpu_custom_call.1} parent=11 // pred_fallthru
          _
      $region12: #{tpu_custom_call.1} parent=5 // pred_fallthru
        _
      %p214 = scmp.lt.s32.totalorder %s16, 2
      // Predicated region
      $region33: #{tpu_custom_call.1} parent=5 // pred_check
        %p215 = pneg %p214
      $region34: #{tpu_custom_call.1} parent=5 // pred_check_branch
        %217 = sbr.rel (%p215) target = $region36
      $region35: #{tpu_custom_call.1} parent=5 // pred_region
        // Predicated region
        $region37: #{tpu_custom_call.1} parent=35 // pred_check
          %p218 = pneg %p36
        $region38: #{tpu_custom_call.1} parent=35 // pred_check_branch
          %220 = sbr.rel (%p218) target = $region40
        $region39: #{tpu_custom_call.1} parent=35 // pred_region
          %p221 = scmp.lt.s32.totalorder %s16, 1
          %s222 = scalar_select %p221, %s16, 1
          %s223 = smul.addr %s222, 8
          %s224 = scalar_lea.vmem %s0, %s223
        $region40: #{tpu_custom_call.1} parent=35 // pred_fallthru
          _
      $region36: #{tpu_custom_call.1} parent=5 // pred_fallthru
        _
      %p225 = scmp.le.s32.totalorder 1, %s16
      %p226 = scmp.lt.s32.totalorder %s16, 3
      %p227 = pnand %p225, %p226
      %p228 = pneg %p227
      // Predicated region
      $region41: #{tpu_custom_call.1} parent=5 // pred_check
        _
      $region42: #{tpu_custom_call.1} parent=5 // pred_check_branch
        %230 = sbr.rel (%p227) target = $region44
      $region43: #{tpu_custom_call.1} parent=5 // pred_region
        %s231 = ssub.s32 %s16, 1
        // Predicated region
        $region45: #{tpu_custom_call.1} parent=43 // pred_check
          %p232 = pneg %p126
        $region46: #{tpu_custom_call.1} parent=43 // pred_check_branch
          %234 = sbr.rel (%p232) target = $region48
        $region47: #{tpu_custom_call.1} parent=43 // pred_region
          %236 = dma.done [#allocation3], 1024
        $region48: #{tpu_custom_call.1} parent=43 // pred_fallthru
          _
        %p237 = scmp.lt.s32.totalorder %s21, 1
        %s238 = scalar_select %p237, %s21, 1
        %s239 = smul.addr %s238, 8
        %s240 = scalar_lea.vmem %s0, %s239
        %p241 = pneg %p42
        %p242 = pneg %p39
        %p243 = pneg %p63
        %p244 = pneg %p60
        %p245 = pneg %p84
        %p246 = pneg %p81
        %p247 = pneg %p105
        %p248 = pneg %p102
        %p249 = pneg %p126
        %p250 = pneg %p123
        %p251 = pneg %p147
        %p252 = pneg %p144
        %p253 = pneg %p173
        %p254 = pneg %p170
        %s255 = sand.u32 %s160, 1
        %s256 = scalar_lea.sflag [#allocation4], %s255
        %s257 = sand.u32 %s160, 1
        %s258 = smul.addr %s257, 8
        %s259 = scalar_lea.vmem [#allocation5], %s258
        %p260 = scmp.lt.s32.totalorder %s21, 1
        %s261 = scalar_select %p260, %s21, 1
        %s262 = smul.addr %s261, 8
        %s263 = scalar_lea.vmem %s0, %s262
        %v265 = vld [vmem:[%s263] sm:$0xff]
        %v266 = vld [vmem:[%s1] sm:$0x1]
        %268 = vset.pattern.permute.xlu0 0
        %269 = vperm.xlu0 %268, %v265
        %v270 = vpop.permute.xlu0 %269
        %v273 = vperm.slane %v266, 0
        %v275 = vmul.f32 %v270, %v273
        %v276 = vand.u32 2147483647, %v275
        %vm277 = vcmp.le.f32.partialorder %v276, 0.7853982
        %vm278 = vcmp.lt.s32.totalorder %v275, 0
        %v279 = vand.u32 %v275, 2139095040
        %v280 = vshrl.u32 %v279, 23
        %v281 = vsub.s32 %v280, 127
        %v282 = vand.u32 2147483647, %v275
        %v283 = vand.u32 %v282, 8388607
        %v284 = vor.u32 %v283, 8388608
        %v285 = vsub.s32 0, %v284
        %v286 = vadd.s32 %v281, 1
        %vm287 = vcmp.gt.s32.totalorder %v286, 0
        %v288 = vsel %vm287, %v286, 0
        %v289 = vshrl.u32 %v288, 5
        %v290 = vand.u32 %v288, 31
        %v291 = vsub.s32 32, %v290
        %v292 = vshrl.u32 683565275, %v291
        %v293 = vshll.u32 683565275, %v290
        %v294 = vshrl.u32 2475754826, %v291
        %v295 = vor.u32 %v293, %v294
        %v296 = vshll.u32 2475754826, %v290
        %v297 = vshrl.u32 2131351028, %v291
        %v298 = vor.u32 %v296, %v297
        %v299 = vshll.u32 2131351028, %v290
        %v300 = vshrl.u32 2102212464, %v291
        %v301 = vor.u32 %v299, %v300
        %v302 = vshll.u32 2102212464, %v290
        %v303 = vshrl.u32 920167782, %v291
        %v304 = vor.u32 %v302, %v303
        %v305 = vshll.u32 920167782, %v290
        %v306 = vshrl.u32 1326507024, %v291
        %v307 = vor.u32 %v305, %v306
        %vm308 = vcmp.lt.s32.totalorder %v289, 1
        %vm309 = vcmp.lt.s32.totalorder %v289, 2
        %vm310 = vcmp.lt.s32.totalorder %v289, 3
        %vm311 = vcmp.lt.s32.totalorder %v289, 4
        %v312 = vsel %vm308, %v292, %v295
        %v313 = vsel %vm311, %v301, 2102212464
        %v314 = vsel %vm310, %v298, %v313
        %v315 = vsel %vm309, %v312, %v314
        %v316 = vsel %vm308, %v295, %v298
        %v317 = vsel %vm311, %v304, 920167782
        %v318 = vsel %vm310, %v301, %v317
        %v319 = vsel %vm309, %v316, %v318
        %v320 = vsel %vm308, %v298, %v301
        %v321 = vsel %vm311, %v307, 1326507024
        %v322 = vsel %vm310, %v304, %v321
        %v323 = vsel %vm309, %v320, %v322
        %v324 = vshll.u32 %v284, 8
        %v325 = vand.u32 %v324, 65535
        %v326 = vshrl.u32 %v324, 16
        %v327 = vand.u32 %v323, 65535
        %v328 = vshrl.u32 %v323, 16
        %v329 = vmul.u32 %v325, %v327
        %v330 = vmul.u32 %v325, %v328
        %v331 = vmul.u32 %v326, %v327
        %v332 = vmul.u32 %v326, %v328
        %v333 = vshll.u32 %v330, 16
        %v334 = vshrl.u32 %v330, 16
        %v335 = vshll.u32 %v331, 16
        %v336 = vshrl.u32 %v331, 16
        %vm337 = vc.u32 %v329, %v333
        %v338 = vsel %vm337, 1, 0
        %v339 = vadd.s32 %v329, %v333
        %v340 = vadd.s32 %v332, %v338
        %vm341 = vc.u32 %v339, %v335
        %v342 = vsel %vm341, 1, 0
        %v343 = vadd.s32 %v339, %v335
        %v344 = vadd.s32 %v340, %v342
        %v345 = vadd.s32 %v344, %v334
        %v346 = vadd.s32 %v345, %v336
        %v347 = vand.u32 %v324, 65535
        %v348 = vshrl.u32 %v324, 16
        %v349 = vand.u32 %v319, 65535
        %v350 = vshrl.u32 %v319, 16
        %v351 = vmul.u32 %v347, %v349
        %v352 = vmul.u32 %v347, %v350
        %v353 = vmul.u32 %v348, %v349
        %v354 = vmul.u32 %v348, %v350
        %v355 = vshll.u32 %v352, 16
        %v356 = vshrl.u32 %v352, 16
        %v357 = vshll.u32 %v353, 16
        %v358 = vshrl.u32 %v353, 16
        %vm359 = vc.u32 %v351, %v355
        %v360 = vsel %vm359, 1, 0
        %v361 = vadd.s32 %v351, %v355
        %v362 = vadd.s32 %v354, %v360
        %vm363 = vc.u32 %v361, %v357
        %v364 = vsel %vm363, 1, 0
        %v365 = vadd.s32 %v361, %v357
        %v366 = vadd.s32 %v362, %v364
        %v367 = vadd.s32 %v366, %v356
        %v368 = vadd.s32 %v367, %v358
        %v369 = vmul.u32 %v324, %v315
        %v370 = vadd.s32 %v346, %v365
        %vm371 = vc.u32 %v346, %v365
        %v372 = vadd.s32 %v368, 1
        %v373 = vsel %vm371, %v372, %v368
        %v374 = vadd.s32 %v369, %v373
        %v375 = vadd.s32 %v374, 536870912
        %v376 = vshrl.u32 %v375, 30
        %v377 = vshll.u32 %v376, 30
        %v378 = vsub.s32 %v374, %v377
        %vm379 = vcmp.lt.s32.totalorder %v378, 0
        %v380 = vsub.s32 0, %v378
        %v381 = vsel %vm379, %v380, %v378
        %v382 = vclz %v381
        %v383 = vsub.s32 %v382, 2
        %vm384 = vcmp.gt.s32.totalorder 0, %v383
        %v385 = vsel %vm384, 0, %v383
        %v386 = vsub.s32 32, %v385
        %v387 = vshll.u32 %v378, %v385
        %v388 = vshrl.u32 %v370, %v386
        %v389 = vor.u32 %v387, %v388
        %v390 = vsub.s32 4294967266, %v385
        %v391 = vadd.s32 %v390, 127
        %v392 = vshll.u32 %v391, 23
        %v393 = vor.u32 4788187, %v392
        %v394 = vand.u32 2147483647, %v393
        %v396 = vcvt.s32.f32 %v389
        %v397 = vmul.f32 %v396, %v394
        %v398 = vxor.u32 %v397, 2147483648
        %v399 = vsel %vm278, %v398, %v397
        %v400 = vsub.s32 4, %v376
        %v401 = vsel %vm278, %v400, %v376
        %v402 = vsel %vm277, %v275, %v399
        %v403 = vsel %vm277, 0, %v401
        %v404 = vmul.f32 %v402, %v402
        %v405 = vmul.f32 %v404, -0.001358992
        %v406 = vadd.f32 %v405, 0.041655596
        %v407 = vmul.f32 %v404, %v406
        %v408 = vadd.f32 %v407, -0.4999988
        %v409 = vmul.f32 %v404, %v408
        %v410 = vadd.f32 1.0, %v409
        %v411 = vmul.f32 %v402, %v402
        %v412 = vmul.f32 %v411, -0.00019511016
        %v413 = vadd.f32 %v412, 0.008332121
        %v414 = vmul.f32 %v411, %v413
        %v415 = vadd.f32 %v414, -0.16666654
        %v416 = vmul.f32 %v411, %v415
        %v417 = vadd.f32 %v416, 1.0
        %v418 = vmul.f32 %v417, %v402
        %vm419 = vweird.f32 %v275
        %v420 = vadd.s32 %v403, 3
        %v421 = vand.u32 %v420, 3
        %vm422 = vcmp.lt.s32.totalorder %v421, 2
        %vm423 = vcmp.eq.s32.totalorder %v421, 0
        %v424 = vxor.u32 %v418, 2147483648
        %v425 = vsel %vm423, %v410, %v424
        %vm426 = vcmp.eq.s32.totalorder %v421, 2
        %v427 = vxor.u32 %v410, 2147483648
        %v428 = vsel %vm426, %v427, %v418
        %v429 = vsel %vm422, %v425, %v428
        %v430 = vsel %vm419, nan, %v429
        %v431 = vand.u32 2147483647, %v275
        %vm432 = vcmp.le.f32.partialorder %v431, 0.7853982
        %vm433 = vcmp.lt.s32.totalorder %v275, 0
        %v434 = vand.u32 %v275, 2139095040
        %v435 = vshrl.u32 %v434, 23
        %v436 = vsub.s32 %v435, 127
        %v437 = vand.u32 2147483647, %v275
        %v438 = vand.u32 %v437, 8388607
        %v439 = vor.u32 %v438, 8388608
        %v440 = vsub.s32 0, %v439
        %v441 = vadd.s32 %v436, 1
        %vm442 = vcmp.gt.s32.totalorder %v441, 0
        %v443 = vsel %vm442, %v441, 0
        %v444 = vshrl.u32 %v443, 5
        %v445 = vand.u32 %v443, 31
        %v446 = vsub.s32 32, %v445
        %v447 = vshrl.u32 683565275, %v446
        %v448 = vshll.u32 683565275, %v445
        %v449 = vshrl.u32 2475754826, %v446
        %v450 = vor.u32 %v448, %v449
        %v451 = vshll.u32 2475754826, %v445
        %v452 = vshrl.u32 2131351028, %v446
        %v453 = vor.u32 %v451, %v452
        %v454 = vshll.u32 2131351028, %v445
        %v455 = vshrl.u32 2102212464, %v446
        %v456 = vor.u32 %v454, %v455
        %v457 = vshll.u32 2102212464, %v445
        %v458 = vshrl.u32 920167782, %v446
        %v459 = vor.u32 %v457, %v458
        %v460 = vshll.u32 920167782, %v445
        %v461 = vshrl.u32 1326507024, %v446
        %v462 = vor.u32 %v460, %v461
        %vm463 = vcmp.lt.s32.totalorder %v444, 1
        %vm464 = vcmp.lt.s32.totalorder %v444, 2
        %vm465 = vcmp.lt.s32.totalorder %v444, 3
        %vm466 = vcmp.lt.s32.totalorder %v444, 4
        %v467 = vsel %vm463, %v447, %v450
        %v468 = vsel %vm466, %v456, 2102212464
        %v469 = vsel %vm465, %v453, %v468
        %v470 = vsel %vm464, %v467, %v469
        %v471 = vsel %vm463, %v450, %v453
        %v472 = vsel %vm466, %v459, 920167782
        %v473 = vsel %vm465, %v456, %v472
        %v474 = vsel %vm464, %v471, %v473
        %v475 = vsel %vm463, %v453, %v456
        %v476 = vsel %vm466, %v462, 1326507024
        %v477 = vsel %vm465, %v459, %v476
        %v478 = vsel %vm464, %v475, %v477
        %v479 = vshll.u32 %v439, 8
        %v480 = vand.u32 %v479, 65535
        %v481 = vshrl.u32 %v479, 16
        %v482 = vand.u32 %v478, 65535
        %v483 = vshrl.u32 %v478, 16
        %v484 = vmul.u32 %v480, %v482
        %v485 = vmul.u32 %v480, %v483
        %v486 = vmul.u32 %v481, %v482
        %v487 = vmul.u32 %v481, %v483
        %v488 = vshll.u32 %v485, 16
        %v489 = vshrl.u32 %v485, 16
        %v490 = vshll.u32 %v486, 16
        %v491 = vshrl.u32 %v486, 16
        %vm492 = vc.u32 %v484, %v488
        %v493 = vsel %vm492, 1, 0
        %v494 = vadd.s32 %v484, %v488
        %v495 = vadd.s32 %v487, %v493
        %vm496 = vc.u32 %v494, %v490
        %v497 = vsel %vm496, 1, 0
        %v498 = vadd.s32 %v494, %v490
        %v499 = vadd.s32 %v495, %v497
        %v500 = vadd.s32 %v499, %v489
        %v501 = vadd.s32 %v500, %v491
        %v502 = vand.u32 %v479, 65535
        %v503 = vshrl.u32 %v479, 16
        %v504 = vand.u32 %v474, 65535
        %v505 = vshrl.u32 %v474, 16
        %v506 = vmul.u32 %v502, %v504
        %v507 = vmul.u32 %v502, %v505
        %v508 = vmul.u32 %v503, %v504
        %v509 = vmul.u32 %v503, %v505
        %v510 = vshll.u32 %v507, 16
        %v511 = vshrl.u32 %v507, 16
        %v512 = vshll.u32 %v508, 16
        %v513 = vshrl.u32 %v508, 16
        %vm514 = vc.u32 %v506, %v510
        %v515 = vsel %vm514, 1, 0
        %v516 = vadd.s32 %v506, %v510
        %v517 = vadd.s32 %v509, %v515
        %vm518 = vc.u32 %v516, %v512
        %v519 = vsel %vm518, 1, 0
        %v520 = vadd.s32 %v516, %v512
        %v521 = vadd.s32 %v517, %v519
        %v522 = vadd.s32 %v521, %v511
        %v523 = vadd.s32 %v522, %v513
        %v524 = vmul.u32 %v479, %v470
        %v525 = vadd.s32 %v501, %v520
        %vm526 = vc.u32 %v501, %v520
        %v527 = vadd.s32 %v523, 1
        %v528 = vsel %vm526, %v527, %v523
        %v529 = vadd.s32 %v524, %v528
        %v530 = vadd.s32 %v529, 536870912
        %v531 = vshrl.u32 %v530, 30
        %v532 = vshll.u32 %v531, 30
        %v533 = vsub.s32 %v529, %v532
        %vm534 = vcmp.lt.s32.totalorder %v533, 0
        %v535 = vsub.s32 0, %v533
        %v536 = vsel %vm534, %v535, %v533
        %v537 = vclz %v536
        %v538 = vsub.s32 %v537, 2
        %vm539 = vcmp.gt.s32.totalorder 0, %v538
        %v540 = vsel %vm539, 0, %v538
        %v541 = vsub.s32 32, %v540
        %v542 = vshll.u32 %v533, %v540
        %v543 = vshrl.u32 %v525, %v541
        %v544 = vor.u32 %v542, %v543
        %v545 = vsub.s32 4294967266, %v540
        %v546 = vadd.s32 %v545, 127
        %v547 = vshll.u32 %v546, 23
        %v548 = vor.u32 4788187, %v547
        %v549 = vand.u32 2147483647, %v548
        %v551 = vcvt.s32.f32 %v544
        %v552 = vmul.f32 %v551, %v549
        %v553 = vxor.u32 %v552, 2147483648
        %v554 = vsel %vm433, %v553, %v552
        %v555 = vsub.s32 4, %v531
        %v556 = vsel %vm433, %v555, %v531
        %v557 = vsel %vm432, %v275, %v554
        %v558 = vsel %vm432, 0, %v556
        %v559 = vmul.f32 %v557, %v557
        %v560 = vmul.f32 %v559, -0.001358992
        %v561 = vadd.f32 %v560, 0.041655596
        %v562 = vmul.f32 %v559, %v561
        %v563 = vadd.f32 %v562, -0.4999988
        %v564 = vmul.f32 %v559, %v563
        %v565 = vadd.f32 1.0, %v564
        %v566 = vmul.f32 %v557, %v557
        %v567 = vmul.f32 %v566, -0.00019511016
        %v568 = vadd.f32 %v567, 0.008332121
        %v569 = vmul.f32 %v566, %v568
        %v570 = vadd.f32 %v569, -0.16666654
        %v571 = vmul.f32 %v566, %v570
        %v572 = vadd.f32 %v571, 1.0
        %v573 = vmul.f32 %v572, %v557
        %vm574 = vweird.f32 %v275
        %v575 = vand.u32 %v558, 3
        %vm576 = vcmp.lt.s32.totalorder %v575, 2
        %vm577 = vcmp.eq.s32.totalorder %v575, 0
        %v578 = vxor.u32 %v573, 2147483648
        %v579 = vsel %vm577, %v565, %v578
        %vm580 = vcmp.eq.s32.totalorder %v575, 2
        %v581 = vxor.u32 %v565, 2147483648
        %v582 = vsel %vm580, %v581, %v573
        %v583 = vsel %vm576, %v579, %v582
        %v584 = vsel %vm574, nan, %v583
        %586 = vrot.lane.b32.xlu0 %v584, 16
        %v587 = vpop.permute.xlu0 %586
        %vm589 = vcmask 130048
        %v590 = vsel %vm589, %v430, %v587
        %v591 = vpack.c.bf16 %v590, %v590
        %v592 = vld [vmem:[%s2] sm:$0xf]
        %v593 = vld [vmem:[%s2 + $0x4] sm:$0xf]
        %v594 = vld [vmem:[%s2 + $0x8] sm:$0xf]
        %v595 = vld [vmem:[%s2 + $0xc] sm:$0xf]
        %v596 = vld [vmem:[%s3] sm:$0x1]
        %v598 = vperm.slane %v596, 0
        %v604 = vunpack.c.l.b16 %v592
        %v605 = vunpack.c.l.b16 %v593
        %v606 = vunpack.c.l.b16 %v594
        %v607 = vunpack.c.l.b16 %v595
        %v608 = vpack.c.b16 %v605, %v604
        %v609 = vpack.c.b16 %v607, %v606
        %vm612 = vcmask 261120
        %v614 = vsel %vm612, %v591, 0
        %616 = vmatpush.bf16.msra.mxu0 0
        %617 = vmatpush.bf16.msra.mxu0 0
        %618 = vmatpush.bf16.msra.mxu0 0
        %619 = vmatpush.bf16.msra.mxu0 0
        %620 = vmatpush.bf16.msra.mxu0 0
        %621 = vmatpush.bf16.msra.mxu0 0
        %622 = vmatpush.bf16.msra.mxu0 %v609
        %623 = vmatpush.bf16.msra.mxu0 %v608
        %624 = vmatmul.bf16.gmra.mxu0 %v614
        %v625 = vpop.f32.mrf.mxu0
        %v626 = vadd.f32 %v598, %v625
        %v627 = vpop.f32.mrf.mxu0
        %628 = vdwg.mxu0
        %v629 = vxor.u32 %v626, 2147483648
        %v630 = vmul.f32 %v629, 1.442695
        %v631 = vpow.pop %v630
        %v632 = vadd.f32 %v631, 1.0
        %v633 = vrcp.pop %v632
        %v634 = vmul.f32 %v632, %v633
        %v635 = vsub.f32 1.0, %v634
        %v636 = vmul.f32 %v633, %v635
        %v637 = vadd.f32 %v633, %v636
        %vm638 = vweird.f32 %v632
        %vm639 = vweird.f32 %v633
        %vm640 = vmor %vm638, %vm639
        %v641 = vsel %vm640, %v633, %v637
        %v642 = vand.u32 2147483647, %v632
        %vm643 = vcmp.eq.f32.partialorder %v642, 8.507059e+37
        %v644 = vand.u32 %v632, 2147483648
        %v645 = vor.u32 1.1754944e-38, %v644
        %v646 = vsel %vm643, %v645, %v641
        %v647 = vmul.f32 1.0, %v646
        %v648 = vmul.f32 %v626, %v647
        %v649 = vpack.c.bf16 %v648, %v648
        %v650 = vld [vmem:[#allocation2] sm:$0xf]
        %v651 = vld [vmem:[#allocation2 + $0x4] sm:$0xf]
        %v652 = vld [vmem:[#allocation2 + $0x8] sm:$0xf]
        %v653 = vld [vmem:[#allocation2 + $0xc] sm:$0xf]
        %v654 = vld [vmem:[#allocation2 + $0x10] sm:$0xf]
        %v655 = vld [vmem:[#allocation2 + $0x14] sm:$0xf]
        %v656 = vld [vmem:[#allocation2 + $0x18] sm:$0xf]
        %v657 = vld [vmem:[#allocation2 + $0x1c] sm:$0xf]
        %v658 = vld [vmem:[#allocation2 + $0x20] sm:$0xf]
        %v659 = vld [vmem:[#allocation2 + $0x24] sm:$0xf]
        %v660 = vld [vmem:[#allocation2 + $0x28] sm:$0xf]
        %v661 = vld [vmem:[#allocation2 + $0x2c] sm:$0xf]
        %v662 = vld [vmem:[#allocation2 + $0x30] sm:$0xf]
        %v663 = vld [vmem:[#allocation2 + $0x34] sm:$0xf]
        %v664 = vld [vmem:[#allocation2 + $0x38] sm:$0xf]
        %v665 = vld [vmem:[#allocation2 + $0x3c] sm:$0xf]
        %v666 = vld [vmem:[%s5] sm:$0x1]
        %v668 = vperm.slane %v666, 0
        %v686 = vunpack.c.l.b16 %v650
        %v687 = vunpack.c.l.b16 %v651
        %v688 = vunpack.c.l.b16 %v652
        %v689 = vunpack.c.l.b16 %v653
        %v690 = vunpack.c.l.b16 %v654
        %v691 = vunpack.c.l.b16 %v655
        %v692 = vunpack.c.l.b16 %v656
        %v693 = vunpack.c.l.b16 %v657
        %v694 = vunpack.c.l.b16 %v658
        %v695 = vunpack.c.l.b16 %v659
        %v696 = vunpack.c.l.b16 %v660
        %v697 = vunpack.c.l.b16 %v661
        %v698 = vunpack.c.l.b16 %v662
        %v699 = vunpack.c.l.b16 %v663
        %v700 = vunpack.c.l.b16 %v664
        %v701 = vunpack.c.l.b16 %v665
        %v702 = vpack.c.b16 %v687, %v686
        %v703 = vpack.c.b16 %v689, %v688
        %v704 = vpack.c.b16 %v691, %v690
        %v705 = vpack.c.b16 %v693, %v692
        %v706 = vpack.c.b16 %v695, %v694
        %v707 = vpack.c.b16 %v697, %v696
        %v708 = vpack.c.b16 %v699, %v698
        %v709 = vpack.c.b16 %v701, %v700
        %718 = vmatpush.bf16.msra.mxu0 %v709
        %719 = vmatpush.bf16.msra.mxu0 %v708
        %720 = vmatpush.bf16.msra.mxu0 %v707
        %721 = vmatpush.bf16.msra.mxu0 %v706
        %722 = vmatpush.bf16.msra.mxu0 %v705
        %723 = vmatpush.bf16.msra.mxu0 %v704
        %724 = vmatpush.bf16.msra.mxu0 %v703
        %725 = vmatpush.bf16.msra.mxu0 %v702
        %726 = vmatmul.bf16.gmra.mxu0 %v649
        %v727 = vpop.f32.mrf.mxu0
        %v728 = vadd.f32 %v668, %v727
        %v729 = vpop.f32.mrf.mxu0
        %730 = vdwg.mxu0
        %731 = vst [vmem:[%s259] sm:$0xff] %v728
        %s732 = sand.u32 %s160, 1
        %s733 = scalar_lea.sflag [#allocation4], %s732
        %s734 = sand.u32 %s160, 1
        %s735 = smul.addr %s734, 8
        %s736 = scalar_lea.vmem [#allocation5], %s735
        // Predicated region
        $region49: #{tpu_custom_call.1} parent=43 // pred_check
          %p737 = pneg %p170
        $region50: #{tpu_custom_call.1} parent=43 // pred_check_branch
          %739 = sbr.rel (%p737) target = $region52
        $region51: #{tpu_custom_call.1} parent=43 // pred_region
          %741 = vsyncadd %s733, 0
          %s742 = smul.addr %s21, 8
          %s743 = scalar_lea.hbm %s6, %s742
          %s745 = sshll.u32 %s736, 4
          %s746 = int_to_ptr.vmem [resolvable:$true] %s745
          %s747 = sshll.u32 %s743, 4
          %s748 = int_to_ptr.hbm [resolvable:$true] %s747
          %750 = dma.vmem_to_hbm [thread:$0]  %s746, 128, %s748, %s733
        $region52: #{tpu_custom_call.1} parent=43 // pred_fallthru
          _
      $region44: #{tpu_custom_call.1} parent=5 // pred_fallthru
        _
      %p751 = scmp.le.s32.totalorder 2, %s16
      // Predicated region
      $region53: #{tpu_custom_call.1} parent=5 // pred_check
        %p752 = pneg %p751
      $region54: #{tpu_custom_call.1} parent=5 // pred_check_branch
        %754 = sbr.rel (%p752) target = $region56
      $region55: #{tpu_custom_call.1} parent=5 // pred_region
        %s755 = ssub.s32 %s16, 2
        // Predicated region
        $region57: #{tpu_custom_call.1} parent=55 // pred_check
          %p756 = pneg %p176
        $region58: #{tpu_custom_call.1} parent=55 // pred_check_branch
          %758 = sbr.rel (%p756) target = $region60
        $region59: #{tpu_custom_call.1} parent=55 // pred_region
          %s759 = sand.u32 %s161, 1
          %s760 = scalar_lea.sflag [#allocation4], %s759
          %s761 = sand.u32 %s161, 1
          %s762 = smul.addr %s761, 8
          %s763 = scalar_lea.vmem [#allocation5], %s762
          %765 = dma.done %s760, 128
        $region60: #{tpu_custom_call.1} parent=55 // pred_fallthru
          _
      $region56: #{tpu_custom_call.1} parent=5 // pred_fallthru
        _
    $region6: #{tpu_custom_call.1} parent=1 // loop_footer
      %s20 = sadd.s32 1, %s16
    $region7: #{tpu_custom_call.1} parent=1 // loop_footer_branch
      %15 = sbr.rel target = $region3
    $region8: #{tpu_custom_call.1} parent=1 // loop_exit
      _
    %766 = vsyncpa [#allocation3], 1
    %s767 = scalar_lea.sflag [#allocation3], 1
    %768 = vsyncpa %s767, 1
    %769 = vsyncpa [#allocation4], 1
    %s770 = scalar_lea.sflag [#allocation4], 1
    %771 = vsyncpa %s770, 1

// kernel: tpu_custom_call.1
$region0: #{tpu_custom_call.1}
  #allocation0 [shape = 'u32[]', space=smem, size = 0x4, offset = 0x4, fixed_abs, tag = 'smem constant byte address 0x4 - core index']
  #allocation1 [shape = 'u32[72,128]{1,0:T(1,128)}', space=vmem, size = 0x9000, scoped, tag = 'internal scratch']
  %s0 = inlined_call_operand.vmem [shape: f32[16,1], index: 0, kind: input, shape index: {}]
  %s1 = inlined_call_operand.vmem [shape: f32[1,16], index: 1, kind: input, shape index: {}]
  %s2 = inlined_call_operand.vmem [shape: bf16[32,128], index: 2, kind: input, shape index: {}]
  %s3 = inlined_call_operand.vmem [shape: f32[1,128], index: 3, kind: input, shape index: {}]
  %s4 = inlined_call_operand.hbm [shape: bf16[128,128], index: 4, kind: input, shape index: {}]
  %s5 = inlined_call_operand.vmem [shape: f32[1,128], index: 5, kind: input, shape index: {}]
  %s6 = inlined_call_operand.hbm [shape: f32[16,128], index: 6, kind: output, shape index: {}]
  %s7 = sld [smem:[#allocation0]]
  $region61: #{tpu_custom_call.1} parent=0
    _
  %s9 = ssub.s32 1, %s7
  %s10 = scalar_select 0, %s9, %s7
  $region1: #{tpu_custom_call.1} parent=0
    #allocation2 [shape = 'u8[32768]{0}', space=vmem, size = 0x8000, scoped, tag = 'input window, operand 4, single buffered']
    #allocation3 [shape = 's32[2]{0}', space=sflag, size = 0x8, scoped, tag = 'scoped memory for tpu_custom_call.1']
    #allocation4 [shape = 's32[2]{0}', space=sflag, size = 0x8, scoped, tag = 'scoped memory for tpu_custom_call.1']
    #allocation5 [shape = 'u8[8192]{0}', space=vmem, size = 0x2000, scoped, tag = 'output window, operand 0']
    %11 = vsyncpa [#allocation3], 0
    %12 = vsyncpa [#allocation4], 0
    %s13 = scalar_lea.sflag [#allocation4], 1
    %14 = vsyncpa %s13, 0
    loop: start=0, step=1, limit=4
    $region2: #{tpu_custom_call.1} parent=1 // loop_pre_header
      _
    $region3: #{tpu_custom_call.1} parent=1 // loop_header
      %s16 = sphi 0, %s20
      %p17 = scmp.ge.s32.totalorder %s16, 4
      %s26 = sphi 0, %s28
      %s29 = sphi 0, %s26
      %s30 = sphi 0, %s29
      %s46 = sphi 0, %s30
      %s50 = sphi 0, %s50
      %s52 = sphi 0, %s50
      %s53 = sphi 0, %s52
      %s67 = sphi 0, %s53
      %s71 = sphi 0, %s71
      %s73 = sphi 0, %s71
      %s74 = sphi 0, %s73
      %s88 = sphi 0, %s74
      %s92 = sphi 0, %s92
      %s94 = sphi 0, %s92
      %s95 = sphi 0, %s94
      %s109 = sphi 0, %s95
      %s113 = sphi 0, %s113
      %s115 = sphi 0, %s113
      %s116 = sphi 0, %s115
      %s130 = sphi 0, %s116
      %s134 = sphi 0, %s134
      %s136 = sphi 0, %s134
      %s137 = sphi 0, %s136
      %s151 = sphi 0, %s137
      %s157 = sphi 0, %s159
      %s160 = sphi 0, %s157
      %s161 = sphi 0, %s160
      %s177 = sphi 0, %s161
    $region4: #{tpu_custom_call.1} parent=1 // loop_header_branch
      %19 = sbr.rel (%p17) target = $region8
    $region5: #{tpu_custom_call.1} parent=1 // loop_body
      %s21 = ssub.s32 %s16, 1
      %s22 = ssub.s32 %s16, 2
      %s23 = sadd.s32 %s16, 1
      %s24 = ssub.s32 %s16, %s23
      %p25 = scmp.eq.s32.totalorder %s24, 0
      %s27 = sadd.s32 %s26, 1
      %s28 = scalar_select %p25, %s26, %s27
      %p31 = pneg %p25
      %p32 = scmp.eq.s32.totalorder %s16, 1
      %p33 = por %p31, %p32
      %p34 = scmp.ne.s32.totalorder %s26, %s29
      %p35 = scmp.eq.s32.totalorder %s16, 0
      %p36 = por %p34, %p35
      %p37 = scmp.ne.s32.totalorder %s26, %s29
      %p38 = scmp.eq.s32.totalorder %s21, 1
      %p39 = por %p37, %p38
      %p40 = scmp.ne.s32.totalorder %s29, %s30
      %p41 = scmp.eq.s32.totalorder %s21, 0
      %p42 = por %p40, %p41
      %p43 = scmp.ne.s32.totalorder %s29, %s30
      %p44 = scmp.eq.s32.totalorder %s22, 1
      %p45 = por %p43, %p44
      %p47 = scmp.ne.s32.totalorder %s30, %s46
      %p48 = scmp.eq.s32.totalorder %s22, 0
      %p49 = por %p47, %p48
      %s51 = sadd.s32 %s50, 1
      %p54 = scmp.eq.s32.totalorder %s16, 1
      %p55 = scmp.ne.s32.totalorder %s50, %s52
      %p56 = scmp.eq.s32.totalorder %s16, 0
      %p57 = por %p55, %p56
      %p58 = scmp.ne.s32.totalorder %s50, %s52
      %p59 = scmp.eq.s32.totalorder %s21, 1
      %p60 = por %p58, %p59
      %p61 = scmp.ne.s32.totalorder %s52, %s53
      %p62 = scmp.eq.s32.totalorder %s21, 0
      %p63 = por %p61, %p62
      %p64 = scmp.ne.s32.totalorder %s52, %s53
      %p65 = scmp.eq.s32.totalorder %s22, 1
      %p66 = por %p64, %p65
      %p68 = scmp.ne.s32.totalorder %s53, %s67
      %p69 = scmp.eq.s32.totalorder %s22, 0
      %p70 = por %p68, %p69
      %s72 = sadd.s32 %s71, 1
      %p75 = scmp.eq.s32.totalorder %s16, 1
      %p76 = scmp.ne.s32.totalorder %s71, %s73
      %p77 = scmp.eq.s32.totalorder %s16, 0
      %p78 = por %p76, %p77
      %p79 = scmp.ne.s32.totalorder %s71, %s73
      %p80 = scmp.eq.s32.totalorder %s21, 1
      %p81 = por %p79, %p80
      %p82 = scmp.ne.s32.totalorder %s73, %s74
      %p83 = scmp.eq.s32.totalorder %s21, 0
      %p84 = por %p82, %p83
      %p85 = scmp.ne.s32.totalorder %s73, %s74
      %p86 = scmp.eq.s32.totalorder %s22, 1
      %p87 = por %p85, %p86
      %p89 = scmp.ne.s32.totalorder %s74, %s88
      %p90 = scmp.eq.s32.totalorder %s22, 0
      %p91 = por %p89, %p90
      %s93 = sadd.s32 %s92, 1
      %p96 = scmp.eq.s32.totalorder %s16, 1
      %p97 = scmp.ne.s32.totalorder %s92, %s94
      %p98 = scmp.eq.s32.totalorder %s16, 0
      %p99 = por %p97, %p98
      %p100 = scmp.ne.s32.totalorder %s92, %s94
      %p101 = scmp.eq.s32.totalorder %s21, 1
      %p102 = por %p100, %p101
      %p103 = scmp.ne.s32.totalorder %s94, %s95
      %p104 = scmp.eq.s32.totalorder %s21, 0
      %p105 = por %p103, %p104
      %p106 = scmp.ne.s32.totalorder %s94, %s95
      %p107 = scmp.eq.s32.totalorder %s22, 1
      %p108 = por %p106, %p107
      %p110 = scmp.ne.s32.totalorder %s95, %s109
      %p111 = scmp.eq.s32.totalorder %s22, 0
      %p112 = por %p110, %p111
      %s114 = sadd.s32 %s113, 1
      %p117 = scmp.eq.s32.totalorder %s16, 1
      %p118 = scmp.ne.s32.totalorder %s113, %s115
      %p119 = scmp.eq.s32.totalorder %s16, 0
      %p120 = por %p118, %p119
      %p121 = scmp.ne.s32.totalorder %s113, %s115
      %p122 = scmp.eq.s32.totalorder %s21, 1
      %p123 = por %p121, %p122
      %p124 = scmp.ne.s32.totalorder %s115, %s116
      %p125 = scmp.eq.s32.totalorder %s21, 0
      %p126 = por %p124, %p125
      %p127 = scmp.ne.s32.totalorder %s115, %s116
      %p128 = scmp.eq.s32.totalorder %s22, 1
      %p129 = por %p127, %p128
      %p131 = scmp.ne.s32.totalorder %s116, %s130
      %p132 = scmp.eq.s32.totalorder %s22, 0
      %p133 = por %p131, %p132
      %s135 = sadd.s32 %s134, 1
      %p138 = scmp.eq.s32.totalorder %s16, 1
      %p139 = scmp.ne.s32.totalorder %s134, %s136
      %p140 = scmp.eq.s32.totalorder %s16, 0
      %p141 = por %p139, %p140
      %p142 = scmp.ne.s32.totalorder %s134, %s136
      %p143 = scmp.eq.s32.totalorder %s21, 1
      %p144 = por %p142, %p143
      %p145 = scmp.ne.s32.totalorder %s136, %s137
      %p146 = scmp.eq.s32.totalorder %s21, 0
      %p147 = por %p145, %p146
      %p148 = scmp.ne.s32.totalorder %s136, %s137
      %p149 = scmp.eq.s32.totalorder %s22, 1
      %p150 = por %p148, %p149
      %p152 = scmp.ne.s32.totalorder %s137, %s151
      %p153 = scmp.eq.s32.totalorder %s22, 0
      %p154 = por %p152, %p153
      %s155 = ssub.s32 %s16, %s23
      %p156 = scmp.eq.s32.totalorder %s155, 0
      %s158 = sadd.s32 %s157, 1
      %s159 = scalar_select %p156, %s157, %s158
      %p162 = pneg %p156
      %p163 = scmp.eq.s32.totalorder %s16, 1
      %p164 = por %p162, %p163
      %p165 = scmp.ne.s32.totalorder %s157, %s160
      %p166 = scmp.eq.s32.totalorder %s16, 0
      %p167 = por %p165, %p166
      %p168 = scmp.ne.s32.totalorder %s157, %s160
      %p169 = scmp.eq.s32.totalorder %s21, 1
      %p170 = por %p168, %p169
      %p171 = scmp.ne.s32.totalorder %s160, %s161
      %p172 = scmp.eq.s32.totalorder %s21, 0
      %p173 = por %p171, %p172
      %p174 = scmp.ne.s32.totalorder %s160, %s161
      %p175 = scmp.eq.s32.totalorder %s22, 1
      %p176 = por %p174, %p175
      %p178 = scmp.ne.s32.totalorder %s161, %s177
      %p179 = scmp.eq.s32.totalorder %s22, 0
      %p180 = por %p178, %p179
      %p181 = scmp.le.s32.totalorder 1, %s16
      %p182 = scmp.lt.s32.totalorder %s16, 3
      %p183 = pnand %p181, %p182
      %p184 = pneg %p183
      // Predicated region
      $region9: #{tpu_custom_call.1} parent=5 // pred_check
        _
      $region10: #{tpu_custom_call.1} parent=5 // pred_check_branch
        %186 = sbr.rel (%p183) target = $region12
      $region11: #{tpu_custom_call.1} parent=5 // pred_region
        %s187 = ssub.s32 %s16, 1
        // Predicated region
        $region13: #{tpu_custom_call.1} parent=11 // pred_check
          %p188 = pneg %p63
        $region14: #{tpu_custom_call.1} parent=11 // pred_check_branch
          %190 = sbr.rel (%p188) target = $region16
        $region15: #{tpu_custom_call.1} parent=11 // pred_region
          _
        $region16: #{tpu_custom_call.1} parent=11 // pred_fallthru
          _
        // Predicated region
        $region17: #{tpu_custom_call.1} parent=11 // pred_check
          %p191 = pneg %p84
        $region18: #{tpu_custom_call.1} parent=11 // pred_check_branch
          %193 = sbr.rel (%p191) target = $region20
        $region19: #{tpu_custom_call.1} parent=11 // pred_region
          _
        $region20: #{tpu_custom_call.1} parent=11 // pred_fallthru
          _
        // Predicated region
        $region21: #{tpu_custom_call.1} parent=11 // pred_check
          %p194 = pneg %p105
        $region22: #{tpu_custom_call.1} parent=11 // pred_check_branch
          %196 = sbr.rel (%p194) target = $region24
        $region23: #{tpu_custom_call.1} parent=11 // pred_region
          _
        $region24: #{tpu_custom_call.1} parent=11 // pred_fallthru
          _
        // Predicated region
        $region25: #{tpu_custom_call.1} parent=11 // pred_check
          %p197 = pneg %p126
        $region26: #{tpu_custom_call.1} parent=11 // pred_check_branch
          %199 = sbr.rel (%p197) target = $region28
        $region27: #{tpu_custom_call.1} parent=11 // pred_region
          %201 = vsyncadd [#allocation3], 0
          %s202 = sshll.u32 %s4, 4
          %s203 = int_to_ptr.hbm [resolvable:$true] %s202
          %s204 = sshll.u32 [#allocation2], 4
          %s205 = int_to_ptr.vmem [resolvable:$true] %s204
          %210 = dma.hbm_to_vmem [thread:$0]  %s203, 1024, %s205, [#allocation3], 64, 64, 4
        $region28: #{tpu_custom_call.1} parent=11 // pred_fallthru
          _
        // Predicated region
        $region29: #{tpu_custom_call.1} parent=11 // pred_check
          %p211 = pneg %p147
        $region30: #{tpu_custom_call.1} parent=11 // pred_check_branch
          %213 = sbr.rel (%p211) target = $region32
        $region31: #{tpu_custom_call.1} parent=11 // pred_region
          _
        $region32: #{tpu_custom_call.1} parent=11 // pred_fallthru
          _
      $region12: #{tpu_custom_call.1} parent=5 // pred_fallthru
        _
      %p214 = scmp.lt.s32.totalorder %s16, 2
      // Predicated region
      $region33: #{tpu_custom_call.1} parent=5 // pred_check
        %p215 = pneg %p214
      $region34: #{tpu_custom_call.1} parent=5 // pred_check_branch
        %217 = sbr.rel (%p215) target = $region36
      $region35: #{tpu_custom_call.1} parent=5 // pred_region
        // Predicated region
        $region37: #{tpu_custom_call.1} parent=35 // pred_check
          %p218 = pneg %p36
        $region38: #{tpu_custom_call.1} parent=35 // pred_check_branch
          %220 = sbr.rel (%p218) target = $region40
        $region39: #{tpu_custom_call.1} parent=35 // pred_region
          %p221 = scmp.lt.s32.totalorder %s16, 1
          %s222 = scalar_select %p221, %s16, 1
          %s223 = smul.addr %s222, 8
          %s224 = scalar_lea.vmem %s0, %s223
        $region40: #{tpu_custom_call.1} parent=35 // pred_fallthru
          _
      $region36: #{tpu_custom_call.1} parent=5 // pred_fallthru
        _
      %p225 = scmp.le.s32.totalorder 1, %s16
      %p226 = scmp.lt.s32.totalorder %s16, 3
      %p227 = pnand %p225, %p226
      %p228 = pneg %p227
      // Predicated region
      $region41: #{tpu_custom_call.1} parent=5 // pred_check
        _
      $region42: #{tpu_custom_call.1} parent=5 // pred_check_branch
        %230 = sbr.rel (%p227) target = $region44
      $region43: #{tpu_custom_call.1} parent=5 // pred_region
        %s231 = ssub.s32 %s16, 1
        // Predicated region
        $region45: #{tpu_custom_call.1} parent=43 // pred_check
          %p232 = pneg %p126
        $region46: #{tpu_custom_call.1} parent=43 // pred_check_branch
          %234 = sbr.rel (%p232) target = $region48
        $region47: #{tpu_custom_call.1} parent=43 // pred_region
          %236 = dma.done [#allocation3], 1024
        $region48: #{tpu_custom_call.1} parent=43 // pred_fallthru
          _
        %p237 = scmp.lt.s32.totalorder %s21, 1
        %s238 = scalar_select %p237, %s21, 1
        %s239 = smul.addr %s238, 8
        %s240 = scalar_lea.vmem %s0, %s239
        %p241 = pneg %p42
        %p242 = pneg %p39
        %p243 = pneg %p63
        %p244 = pneg %p60
        %p245 = pneg %p84
        %p246 = pneg %p81
        %p247 = pneg %p105
        %p248 = pneg %p102
        %p249 = pneg %p126
        %p250 = pneg %p123
        %p251 = pneg %p147
        %p252 = pneg %p144
        %p253 = pneg %p173
        %p254 = pneg %p170
        %s255 = sand.u32 %s160, 1
        %s256 = scalar_lea.sflag [#allocation4], %s255
        %s257 = sand.u32 %s160, 1
        %s258 = smul.addr %s257, 8
        %s259 = scalar_lea.vmem [#allocation5], %s258
        %p260 = scmp.lt.s32.totalorder %s21, 1
        %s261 = scalar_select %p260, %s21, 1
        %s262 = smul.addr %s261, 8
        %s263 = scalar_lea.vmem %s0, %s262
        %v265 = vld [vmem:[%s263] sm:$0xff]
        %v266 = vld [vmem:[%s1] sm:$0x1]
        %268 = vset.pattern.permute.xlu0 0
        %269 = vperm.xlu0 %268, %v265
        %v270 = vpop.permute.xlu0 %269
        %v273 = vperm.slane %v266, 0
        %v275 = vmul.f32 %v270, %v273
        %v276 = vand.u32 2147483647, %v275
        %vm277 = vcmp.le.f32.partialorder %v276, 0.7853982
        %vm278 = vcmp.lt.s32.totalorder %v275, 0
        %v279 = vand.u32 %v275, 2139095040
        %v280 = vshrl.u32 %v279, 23
        %v281 = vsub.s32 %v280, 127
        %v282 = vand.u32 2147483647, %v275
        %v283 = vand.u32 %v282, 8388607
        %v284 = vor.u32 %v283, 8388608
        %v285 = vsub.s32 0, %v284
        %v286 = vadd.s32 %v281, 1
        %vm287 = vcmp.gt.s32.totalorder %v286, 0
        %v288 = vsel %vm287, %v286, 0
        %v289 = vshrl.u32 %v288, 5
        %v290 = vand.u32 %v288, 31
        %v291 = vsub.s32 32, %v290
        %v292 = vshrl.u32 683565275, %v291
        %v293 = vshll.u32 683565275, %v290
        %v294 = vshrl.u32 2475754826, %v291
        %v295 = vor.u32 %v293, %v294
        %v296 = vshll.u32 2475754826, %v290
        %v297 = vshrl.u32 2131351028, %v291
        %v298 = vor.u32 %v296, %v297
        %v299 = vshll.u32 2131351028, %v290
        %v300 = vshrl.u32 2102212464, %v291
        %v301 = vor.u32 %v299, %v300
        %v302 = vshll.u32 2102212464, %v290
        %v303 = vshrl.u32 920167782, %v291
        %v304 = vor.u32 %v302, %v303
        %v305 = vshll.u32 920167782, %v290
        %v306 = vshrl.u32 1326507024, %v291
        %v307 = vor.u32 %v305, %v306
        %vm308 = vcmp.lt.s32.totalorder %v289, 1
        %vm309 = vcmp.lt.s32.totalorder %v289, 2
        %vm310 = vcmp.lt.s32.totalorder %v289, 3
        %vm311 = vcmp.lt.s32.totalorder %v289, 4
        %v312 = vsel %vm308, %v292, %v295
        %v313 = vsel %vm311, %v301, 2102212464
        %v314 = vsel %vm310, %v298, %v313
        %v315 = vsel %vm309, %v312, %v314
        %v316 = vsel %vm308, %v295, %v298
        %v317 = vsel %vm311, %v304, 920167782
        %v318 = vsel %vm310, %v301, %v317
        %v319 = vsel %vm309, %v316, %v318
        %v320 = vsel %vm308, %v298, %v301
        %v321 = vsel %vm311, %v307, 1326507024
        %v322 = vsel %vm310, %v304, %v321
        %v323 = vsel %vm309, %v320, %v322
        %v324 = vshll.u32 %v284, 8
        %v325 = vand.u32 %v324, 65535
        %v326 = vshrl.u32 %v324, 16
        %v327 = vand.u32 %v323, 65535
        %v328 = vshrl.u32 %v323, 16
        %v329 = vmul.u32 %v325, %v327
        %v330 = vmul.u32 %v325, %v328
        %v331 = vmul.u32 %v326, %v327
        %v332 = vmul.u32 %v326, %v328
        %v333 = vshll.u32 %v330, 16
        %v334 = vshrl.u32 %v330, 16
        %v335 = vshll.u32 %v331, 16
        %v336 = vshrl.u32 %v331, 16
        %vm337 = vc.u32 %v329, %v333
        %v338 = vsel %vm337, 1, 0
        %v339 = vadd.s32 %v329, %v333
        %v340 = vadd.s32 %v332, %v338
        %vm341 = vc.u32 %v339, %v335
        %v342 = vsel %vm341, 1, 0
        %v343 = vadd.s32 %v339, %v335
        %v344 = vadd.s32 %v340, %v342
        %v345 = vadd.s32 %v344, %v334
        %v346 = vadd.s32 %v345, %v336
        %v347 = vand.u32 %v324, 65535
        %v348 = vshrl.u32 %v324, 16
        %v349 = vand.u32 %v319, 65535
        %v350 = vshrl.u32 %v319, 16
        %v351 = vmul.u32 %v347, %v349
        %v352 = vmul.u32 %v347, %v350
        %v353 = vmul.u32 %v348, %v349
        %v354 = vmul.u32 %v348, %v350
        %v355 = vshll.u32 %v352, 16
        %v356 = vshrl.u32 %v352, 16
        %v357 = vshll.u32 %v353, 16
        %v358 = vshrl.u32 %v353, 16
        %vm359 = vc.u32 %v351, %v355
        %v360 = vsel %vm359, 1, 0
        %v361 = vadd.s32 %v351, %v355
        %v362 = vadd.s32 %v354, %v360
        %vm363 = vc.u32 %v361, %v357
        %v364 = vsel %vm363, 1, 0
        %v365 = vadd.s32 %v361, %v357
        %v366 = vadd.s32 %v362, %v364
        %v367 = vadd.s32 %v366, %v356
        %v368 = vadd.s32 %v367, %v358
        %v369 = vmul.u32 %v324, %v315
        %v370 = vadd.s32 %v346, %v365
        %vm371 = vc.u32 %v346, %v365
        %v372 = vadd.s32 %v368, 1
        %v373 = vsel %vm371, %v372, %v368
        %v374 = vadd.s32 %v369, %v373
        %v375 = vadd.s32 %v374, 536870912
        %v376 = vshrl.u32 %v375, 30
        %v377 = vshll.u32 %v376, 30
        %v378 = vsub.s32 %v374, %v377
        %vm379 = vcmp.lt.s32.totalorder %v378, 0
        %v380 = vsub.s32 0, %v378
        %v381 = vsel %vm379, %v380, %v378
        %v382 = vclz %v381
        %v383 = vsub.s32 %v382, 2
        %vm384 = vcmp.gt.s32.totalorder 0, %v383
        %v385 = vsel %vm384, 0, %v383
        %v386 = vsub.s32 32, %v385
        %v387 = vshll.u32 %v378, %v385
        %v388 = vshrl.u32 %v370, %v386
        %v389 = vor.u32 %v387, %v388
        %v390 = vsub.s32 4294967266, %v385
        %v391 = vadd.s32 %v390, 127
        %v392 = vshll.u32 %v391, 23
        %v393 = vor.u32 4788187, %v392
        %v394 = vand.u32 2147483647, %v393
        %v396 = vcvt.s32.f32 %v389
        %v397 = vmul.f32 %v396, %v394
        %v398 = vxor.u32 %v397, 2147483648
        %v399 = vsel %vm278, %v398, %v397
        %v400 = vsub.s32 4, %v376
        %v401 = vsel %vm278, %v400, %v376
        %v402 = vsel %vm277, %v275, %v399
        %v403 = vsel %vm277, 0, %v401
        %v404 = vmul.f32 %v402, %v402
        %v405 = vmul.f32 %v404, -0.001358992
        %v406 = vadd.f32 %v405, 0.041655596
        %v407 = vmul.f32 %v404, %v406
        %v408 = vadd.f32 %v407, -0.4999988
        %v409 = vmul.f32 %v404, %v408
        %v410 = vadd.f32 1.0, %v409
        %v411 = vmul.f32 %v402, %v402
        %v412 = vmul.f32 %v411, -0.00019511016
        %v413 = vadd.f32 %v412, 0.008332121
        %v414 = vmul.f32 %v411, %v413
        %v415 = vadd.f32 %v414, -0.16666654
        %v416 = vmul.f32 %v411, %v415
        %v417 = vadd.f32 %v416, 1.0
        %v418 = vmul.f32 %v417, %v402
        %vm419 = vweird.f32 %v275
        %v420 = vadd.s32 %v403, 3
        %v421 = vand.u32 %v420, 3
        %vm422 = vcmp.lt.s32.totalorder %v421, 2
        %vm423 = vcmp.eq.s32.totalorder %v421, 0
        %v424 = vxor.u32 %v418, 2147483648
        %v425 = vsel %vm423, %v410, %v424
        %vm426 = vcmp.eq.s32.totalorder %v421, 2
        %v427 = vxor.u32 %v410, 2147483648
        %v428 = vsel %vm426, %v427, %v418
        %v429 = vsel %vm422, %v425, %v428
        %v430 = vsel %vm419, nan, %v429
        %v431 = vand.u32 2147483647, %v275
        %vm432 = vcmp.le.f32.partialorder %v431, 0.7853982
        %vm433 = vcmp.lt.s32.totalorder %v275, 0
        %v434 = vand.u32 %v275, 2139095040
        %v435 = vshrl.u32 %v434, 23
        %v436 = vsub.s32 %v435, 127
        %v437 = vand.u32 2147483647, %v275
        %v438 = vand.u32 %v437, 8388607
        %v439 = vor.u32 %v438, 8388608
        %v440 = vsub.s32 0, %v439
        %v441 = vadd.s32 %v436, 1
        %vm442 = vcmp.gt.s32.totalorder %v441, 0
        %v443 = vsel %vm442, %v441, 0
        %v444 = vshrl.u32 %v443, 5
        %v445 = vand.u32 %v443, 31
        %v446 = vsub.s32 32, %v445
        %v447 = vshrl.u32 683565275, %v446
        %v448 = vshll.u32 683565275, %v445
        %v449 = vshrl.u32 2475754826, %v446
        %v450 = vor.u32 %v448, %v449
        %v451 = vshll.u32 2475754826, %v445
        %v452 = vshrl.u32 2131351028, %v446
        %v453 = vor.u32 %v451, %v452
        %v454 = vshll.u32 2131351028, %v445
        %v455 = vshrl.u32 2102212464, %v446
        %v456 = vor.u32 %v454, %v455
        %v457 = vshll.u32 2102212464, %v445
        %v458 = vshrl.u32 920167782, %v446
        %v459 = vor.u32 %v457, %v458
        %v460 = vshll.u32 920167782, %v445
        %v461 = vshrl.u32 1326507024, %v446
        %v462 = vor.u32 %v460, %v461
        %vm463 = vcmp.lt.s32.totalorder %v444, 1
        %vm464 = vcmp.lt.s32.totalorder %v444, 2
        %vm465 = vcmp.lt.s32.totalorder %v444, 3
        %vm466 = vcmp.lt.s32.totalorder %v444, 4
        %v467 = vsel %vm463, %v447, %v450
        %v468 = vsel %vm466, %v456, 2102212464
        %v469 = vsel %vm465, %v453, %v468
        %v470 = vsel %vm464, %v467, %v469
        %v471 = vsel %vm463, %v450, %v453
        %v472 = vsel %vm466, %v459, 920167782
        %v473 = vsel %vm465, %v456, %v472
        %v474 = vsel %vm464, %v471, %v473
        %v475 = vsel %vm463, %v453, %v456
        %v476 = vsel %vm466, %v462, 1326507024
        %v477 = vsel %vm465, %v459, %v476
        %v478 = vsel %vm464, %v475, %v477
        %v479 = vshll.u32 %v439, 8
        %v480 = vand.u32 %v479, 65535
        %v481 = vshrl.u32 %v479, 16
        %v482 = vand.u32 %v478, 65535
        %v483 = vshrl.u32 %v478, 16
        %v484 = vmul.u32 %v480, %v482
        %v485 = vmul.u32 %v480, %v483
        %v486 = vmul.u32 %v481, %v482
        %v487 = vmul.u32 %v481, %v483
        %v488 = vshll.u32 %v485, 16
        %v489 = vshrl.u32 %v485, 16
        %v490 = vshll.u32 %v486, 16
        %v491 = vshrl.u32 %v486, 16
        %vm492 = vc.u32 %v484, %v488
        %v493 = vsel %vm492, 1, 0
        %v494 = vadd.s32 %v484, %v488
        %v495 = vadd.s32 %v487, %v493
        %vm496 = vc.u32 %v494, %v490
        %v497 = vsel %vm496, 1, 0
        %v498 = vadd.s32 %v494, %v490
        %v499 = vadd.s32 %v495, %v497
        %v500 = vadd.s32 %v499, %v489
        %v501 = vadd.s32 %v500, %v491
        %v502 = vand.u32 %v479, 65535
        %v503 = vshrl.u32 %v479, 16
        %v504 = vand.u32 %v474, 65535
        %v505 = vshrl.u32 %v474, 16
        %v506 = vmul.u32 %v502, %v504
        %v507 = vmul.u32 %v502, %v505
        %v508 = vmul.u32 %v503, %v504
        %v509 = vmul.u32 %v503, %v505
        %v510 = vshll.u32 %v507, 16
        %v511 = vshrl.u32 %v507, 16
        %v512 = vshll.u32 %v508, 16
        %v513 = vshrl.u32 %v508, 16
        %vm514 = vc.u32 %v506, %v510
        %v515 = vsel %vm514, 1, 0
        %v516 = vadd.s32 %v506, %v510
        %v517 = vadd.s32 %v509, %v515
        %vm518 = vc.u32 %v516, %v512
        %v519 = vsel %vm518, 1, 0
        %v520 = vadd.s32 %v516, %v512
        %v521 = vadd.s32 %v517, %v519
        %v522 = vadd.s32 %v521, %v511
        %v523 = vadd.s32 %v522, %v513
        %v524 = vmul.u32 %v479, %v470
        %v525 = vadd.s32 %v501, %v520
        %vm526 = vc.u32 %v501, %v520
        %v527 = vadd.s32 %v523, 1
        %v528 = vsel %vm526, %v527, %v523
        %v529 = vadd.s32 %v524, %v528
        %v530 = vadd.s32 %v529, 536870912
        %v531 = vshrl.u32 %v530, 30
        %v532 = vshll.u32 %v531, 30
        %v533 = vsub.s32 %v529, %v532
        %vm534 = vcmp.lt.s32.totalorder %v533, 0
        %v535 = vsub.s32 0, %v533
        %v536 = vsel %vm534, %v535, %v533
        %v537 = vclz %v536
        %v538 = vsub.s32 %v537, 2
        %vm539 = vcmp.gt.s32.totalorder 0, %v538
        %v540 = vsel %vm539, 0, %v538
        %v541 = vsub.s32 32, %v540
        %v542 = vshll.u32 %v533, %v540
        %v543 = vshrl.u32 %v525, %v541
        %v544 = vor.u32 %v542, %v543
        %v545 = vsub.s32 4294967266, %v540
        %v546 = vadd.s32 %v545, 127
        %v547 = vshll.u32 %v546, 23
        %v548 = vor.u32 4788187, %v547
        %v549 = vand.u32 2147483647, %v548
        %v551 = vcvt.s32.f32 %v544
        %v552 = vmul.f32 %v551, %v549
        %v553 = vxor.u32 %v552, 2147483648
        %v554 = vsel %vm433, %v553, %v552
        %v555 = vsub.s32 4, %v531
        %v556 = vsel %vm433, %v555, %v531
        %v557 = vsel %vm432, %v275, %v554
        %v558 = vsel %vm432, 0, %v556
        %v559 = vmul.f32 %v557, %v557
        %v560 = vmul.f32 %v559, -0.001358992
        %v561 = vadd.f32 %v560, 0.041655596
        %v562 = vmul.f32 %v559, %v561
        %v563 = vadd.f32 %v562, -0.4999988
        %v564 = vmul.f32 %v559, %v563
        %v565 = vadd.f32 1.0, %v564
        %v566 = vmul.f32 %v557, %v557
        %v567 = vmul.f32 %v566, -0.00019511016
        %v568 = vadd.f32 %v567, 0.008332121
        %v569 = vmul.f32 %v566, %v568
        %v570 = vadd.f32 %v569, -0.16666654
        %v571 = vmul.f32 %v566, %v570
        %v572 = vadd.f32 %v571, 1.0
        %v573 = vmul.f32 %v572, %v557
        %vm574 = vweird.f32 %v275
        %v575 = vand.u32 %v558, 3
        %vm576 = vcmp.lt.s32.totalorder %v575, 2
        %vm577 = vcmp.eq.s32.totalorder %v575, 0
        %v578 = vxor.u32 %v573, 2147483648
        %v579 = vsel %vm577, %v565, %v578
        %vm580 = vcmp.eq.s32.totalorder %v575, 2
        %v581 = vxor.u32 %v565, 2147483648
        %v582 = vsel %vm580, %v581, %v573
        %v583 = vsel %vm576, %v579, %v582
        %v584 = vsel %vm574, nan, %v583
        %586 = vrot.lane.b32.xlu0 %v584, 16
        %v587 = vpop.permute.xlu0 %586
        %vm589 = vcmask 130048
        %v590 = vsel %vm589, %v430, %v587
        %v591 = vpack.c.bf16 %v590, %v590
        %v592 = vld [vmem:[%s2] sm:$0xf]
        %v593 = vld [vmem:[%s2 + $0x4] sm:$0xf]
        %v594 = vld [vmem:[%s2 + $0x8] sm:$0xf]
        %v595 = vld [vmem:[%s2 + $0xc] sm:$0xf]
        %v596 = vld [vmem:[%s3] sm:$0x1]
        %v598 = vperm.slane %v596, 0
        %v604 = vunpack.c.l.b16 %v592
        %v605 = vunpack.c.l.b16 %v593
        %v606 = vunpack.c.l.b16 %v594
        %v607 = vunpack.c.l.b16 %v595
        %v608 = vpack.c.b16 %v605, %v604
        %v609 = vpack.c.b16 %v607, %v606
        %vm612 = vcmask 261120
        %v614 = vsel %vm612, %v591, 0
        %616 = vmatpush.bf16.msra.mxu0 0
        %617 = vmatpush.bf16.msra.mxu0 0
        %618 = vmatpush.bf16.msra.mxu0 0
        %619 = vmatpush.bf16.msra.mxu0 0
        %620 = vmatpush.bf16.msra.mxu0 0
        %621 = vmatpush.bf16.msra.mxu0 0
        %622 = vmatpush.bf16.msra.mxu0 %v609
        %623 = vmatpush.bf16.msra.mxu0 %v608
        %624 = vmatmul.bf16.gmra.mxu0 %v614
        %v625 = vpop.f32.mrf.mxu0
        %v626 = vadd.f32 %v598, %v625
        %v627 = vpop.f32.mrf.mxu0
        %628 = vdwg.mxu0
        %v629 = vxor.u32 %v626, 2147483648
        %v630 = vmul.f32 %v629, 1.442695
        %v631 = vpow.pop %v630
        %v632 = vadd.f32 %v631, 1.0
        %v633 = vrcp.pop %v632
        %v634 = vmul.f32 %v632, %v633
        %v635 = vsub.f32 1.0, %v634
        %v636 = vmul.f32 %v633, %v635
        %v637 = vadd.f32 %v633, %v636
        %vm638 = vweird.f32 %v632
        %vm639 = vweird.f32 %v633
        %vm640 = vmor %vm638, %vm639
        %v641 = vsel %vm640, %v633, %v637
        %v642 = vand.u32 2147483647, %v632
        %vm643 = vcmp.eq.f32.partialorder %v642, 8.507059e+37
        %v644 = vand.u32 %v632, 2147483648
        %v645 = vor.u32 1.1754944e-38, %v644
        %v646 = vsel %vm643, %v645, %v641
        %v647 = vmul.f32 1.0, %v646
        %v648 = vmul.f32 %v626, %v647
        %v649 = vpack.c.bf16 %v648, %v648
        %v650 = vld [vmem:[#allocation2] sm:$0xf]
        %v651 = vld [vmem:[#allocation2 + $0x4] sm:$0xf]
        %v652 = vld [vmem:[#allocation2 + $0x8] sm:$0xf]
        %v653 = vld [vmem:[#allocation2 + $0xc] sm:$0xf]
        %v654 = vld [vmem:[#allocation2 + $0x10] sm:$0xf]
        %v655 = vld [vmem:[#allocation2 + $0x14] sm:$0xf]
        %v656 = vld [vmem:[#allocation2 + $0x18] sm:$0xf]
        %v657 = vld [vmem:[#allocation2 + $0x1c] sm:$0xf]
        %v658 = vld [vmem:[#allocation2 + $0x20] sm:$0xf]
        %v659 = vld [vmem:[#allocation2 + $0x24] sm:$0xf]
        %v660 = vld [vmem:[#allocation2 + $0x28] sm:$0xf]
        %v661 = vld [vmem:[#allocation2 + $0x2c] sm:$0xf]
        %v662 = vld [vmem:[#allocation2 + $0x30] sm:$0xf]
        %v663 = vld [vmem:[#allocation2 + $0x34] sm:$0xf]
        %v664 = vld [vmem:[#allocation2 + $0x38] sm:$0xf]
        %v665 = vld [vmem:[#allocation2 + $0x3c] sm:$0xf]
        %v666 = vld [vmem:[%s5] sm:$0x1]
        %v668 = vperm.slane %v666, 0
        %v686 = vunpack.c.l.b16 %v650
        %v687 = vunpack.c.l.b16 %v651
        %v688 = vunpack.c.l.b16 %v652
        %v689 = vunpack.c.l.b16 %v653
        %v690 = vunpack.c.l.b16 %v654
        %v691 = vunpack.c.l.b16 %v655
        %v692 = vunpack.c.l.b16 %v656
        %v693 = vunpack.c.l.b16 %v657
        %v694 = vunpack.c.l.b16 %v658
        %v695 = vunpack.c.l.b16 %v659
        %v696 = vunpack.c.l.b16 %v660
        %v697 = vunpack.c.l.b16 %v661
        %v698 = vunpack.c.l.b16 %v662
        %v699 = vunpack.c.l.b16 %v663
        %v700 = vunpack.c.l.b16 %v664
        %v701 = vunpack.c.l.b16 %v665
        %v702 = vpack.c.b16 %v687, %v686
        %v703 = vpack.c.b16 %v689, %v688
        %v704 = vpack.c.b16 %v691, %v690
        %v705 = vpack.c.b16 %v693, %v692
        %v706 = vpack.c.b16 %v695, %v694
        %v707 = vpack.c.b16 %v697, %v696
        %v708 = vpack.c.b16 %v699, %v698
        %v709 = vpack.c.b16 %v701, %v700
        %718 = vmatpush.bf16.msra.mxu0 %v709
        %719 = vmatpush.bf16.msra.mxu0 %v708
        %720 = vmatpush.bf16.msra.mxu0 %v707
        %721 = vmatpush.bf16.msra.mxu0 %v706
        %722 = vmatpush.bf16.msra.mxu0 %v705
        %723 = vmatpush.bf16.msra.mxu0 %v704
        %724 = vmatpush.bf16.msra.mxu0 %v703
        %725 = vmatpush.bf16.msra.mxu0 %v702
        %726 = vmatmul.bf16.gmra.mxu0 %v649
        %v727 = vpop.f32.mrf.mxu0
        %v728 = vadd.f32 %v668, %v727
        %v729 = vpop.f32.mrf.mxu0
        %730 = vdwg.mxu0
        %731 = vst [vmem:[%s259] sm:$0xff] %v728
        %s732 = sand.u32 %s160, 1
        %s733 = scalar_lea.sflag [#allocation4], %s732
        %s734 = sand.u32 %s160, 1
        %s735 = smul.addr %s734, 8
        %s736 = scalar_lea.vmem [#allocation5], %s735
        // Predicated region
        $region49: #{tpu_custom_call.1} parent=43 // pred_check
          %p737 = pneg %p170
        $region50: #{tpu_custom_call.1} parent=43 // pred_check_branch
          %739 = sbr.rel (%p737) target = $region52
        $region51: #{tpu_custom_call.1} parent=43 // pred_region
          %741 = vsyncadd %s733, 0
          %s742 = smul.addr %s21, 8
          %s743 = scalar_lea.hbm %s6, %s742
          %s745 = sshll.u32 %s736, 4
          %s746 = int_to_ptr.vmem [resolvable:$true] %s745
          %s747 = sshll.u32 %s743, 4
          %s748 = int_to_ptr.hbm [resolvable:$true] %s747
          %750 = dma.vmem_to_hbm [thread:$0]  %s746, 128, %s748, %s733
        $region52: #{tpu_custom_call.1} parent=43 // pred_fallthru
          _
      $region44: #{tpu_custom_call.1} parent=5 // pred_fallthru
        _
      %p751 = scmp.le.s32.totalorder 2, %s16
      // Predicated region
      $region53: #{tpu_custom_call.1} parent=5 // pred_check
        %p752 = pneg %p751
      $region54: #{tpu_custom_call.1} parent=5 // pred_check_branch
        %754 = sbr.rel (%p752) target = $region56
      $region55: #{tpu_custom_call.1} parent=5 // pred_region
        %s755 = ssub.s32 %s16, 2
        // Predicated region
        $region57: #{tpu_custom_call.1} parent=55 // pred_check
          %p756 = pneg %p176
        $region58: #{tpu_custom_call.1} parent=55 // pred_check_branch
          %758 = sbr.rel (%p756) target = $region60
        $region59: #{tpu_custom_call.1} parent=55 // pred_region
          %s759 = sand.u32 %s161, 1
          %s760 = scalar_lea.sflag [#allocation4], %s759
          %s761 = sand.u32 %s161, 1
          %s762 = smul.addr %s761, 8
          %s763 = scalar_lea.vmem [#allocation5], %s762
          %765 = dma.done %s760, 128
        $region60: #{tpu_custom_call.1} parent=55 // pred_fallthru
          _
      $region56: #{tpu_custom_call.1} parent=5 // pred_fallthru
        _
    $region6: #{tpu_custom_call.1} parent=1 // loop_footer
      %s20 = sadd.s32 1, %s16
    $region7: #{tpu_custom_call.1} parent=1 // loop_footer_branch
      %15 = sbr.rel target = $region3
    $region8: #{tpu_custom_call.1} parent=1 // loop_exit
      _
    %766 = vsyncpa [#allocation3], 1
    %s767 = scalar_lea.sflag [#allocation3], 1
    %768 = vsyncpa %s767, 1
    %769 = vsyncpa [#allocation4], 1
    %s770 = scalar_lea.sflag [#allocation4], 1
    %771 = vsyncpa %s770, 1

</llo_original>
